<compile_context>
chip_gen: v6e
topology: v6e:2x2x1
jax: 0.10.0
libtpu: 0.0.40
codegen_flags: <defaults>
</compile_context>

<pallas_src>
import jax
import jax.numpy as jnp
from jax.experimental import pallas as pl
from jax.experimental.pallas import tpu as pltpu


def _decoder_kernel(xh_ref, c_ref, wbd_ref,
                    w_xh_ref, b_iou_ref, w_muv_ref, b_muv_ref,
                    out_ref):
    t_rows, slab_w = out_ref.shape
    tn, two_l, _ = wbd_ref.shape
    F = c_ref.shape[-1]
    nz = t_rows // tn

    xh = xh_ref[...]                       # (t_rows, 2F) = [z_latency | latency_sum]
    c0 = c_ref[...]                        # (t_rows, F)  = aggregated (f-gated) child cell

    # Child-sum TreeLSTM gates: one fused MXU dot for W_iou*x + U_iou*h_sum.
    # The weight's lane width is the TOTAL gate width rounded up to 128 (not
    # per-gate padded); gate extraction below is static intra-vreg slicing.
    iou = (jnp.dot(xh, w_xh_ref[...], preferred_element_type=jnp.float32)
           + b_iou_ref[...])               # (t_rows, round_up(3F, 128))
    i = jax.nn.sigmoid(iou[:, 0 * F:1 * F])
    o = jax.nn.sigmoid(iou[:, 1 * F:2 * F])
    u = jnp.tanh(iou[:, 2 * F:3 * F])

    c_new = i * u + c0                     # latency_c already carries the forget-gated sum
    h = o * jnp.tanh(c_new)

    # Fused mu / logvar Linear: one dot against [w_mu | w_logvar].
    muv0 = (jnp.dot(h, w_muv_ref[...], preferred_element_type=jnp.float32)
            + b_muv_ref[...])              # (t_rows, 2L) = [mu0 | logvar0]

    # Op-wise bilinear: ONE batched dot per node against the 2Lx2L
    # block-diagonal [w_mu (+) w_logvar]; result is lane-contiguous [mu | logvar].
    muv = jnp.einsum('nkl,nlm->nkm',
                     muv0.reshape(tn, nz, two_l), wbd_ref[...],
                     preferred_element_type=jnp.float32).reshape(t_rows, two_l)

    # Single lane-dense (>=128-wide) output slab: [h | c_new | mu | logvar | pad].
    out_ref[:, 0:F] = h
    out_ref[:, F:2 * F] = c_new
    out_ref[:, 2 * F:2 * F + two_l] = muv
    pad = slab_w - (2 * F + two_l)
    if pad:                                # keep the pad lanes deterministic
        out_ref[:, 2 * F + two_l:] = jnp.zeros((t_rows, pad), out_ref.dtype)


def tree_lstm_latency_decoder(z_latency, latency_sum, latency_c, operation_id,
                              params, *, tile_nodes=None):
    """Returns (mu, logvar, h, new_latency_c)."""
    N, nz, F = z_latency.shape
    L = params["w_mu"].shape[1]
    two_l = 2 * L

    if tile_nodes is None:
        # Single grid step at small N (per-step overhead dominates).  When N
        # scales, pick tile_nodes so tile_nodes*nz >= 256 rows (feed the MXU;
        # >=128 on v5e) and N // tile_nodes >= 2 grid steps (v7x megacore).
        tile_nodes = N
    assert N % tile_nodes == 0, "tile_nodes must divide the node count"
    t_rows = tile_nodes * nz
    if tile_nodes < N:
        assert t_rows % 8 == 0, (
            "tile_nodes * nz must be a multiple of 8 (sublane tile) whenever "
            "the node axis is actually tiled")
    rows = N * nz

    # ---- glue (plain XLA): embedding gather, weight fusion, flattening ----
    # nn.Embedding lookup + per-node block-diagonal [w_mu (+) w_logvar] (2L, 2L).
    emb = params["op_emb"][operation_id].reshape(N, L, two_l)
    wbd = jnp.zeros((N, two_l, two_l), jnp.float32)
    wbd = wbd.at[:, :L, :L].set(emb[:, :, :L])
    wbd = wbd.at[:, L:, L:].set(emb[:, :, L:])

    # Fused [W_iou; U_iou], padded only to the next 128-lane multiple of 3F.
    PW = ((3 * F + 127) // 128) * 128
    w_xh = jnp.pad(jnp.concatenate([params["w_iou"], params["u_iou"]], axis=0),
                   ((0, 0), (0, PW - 3 * F)))                      # (2F, PW)
    b_iou = jnp.pad(params["b_iou"], ((0, 0), (0, PW - 3 * F)))    # (1, PW)

    w_muv = jnp.concatenate([params["w_mu"], params["w_lv"]], axis=1)   # (F, 2L)
    b_muv = jnp.concatenate([params["b_mu"], params["b_lv"]], axis=1)   # (1, 2L)

    # Flatten node/latent axes outside the kernel (free layout plumbing).
    xh = jnp.concatenate([z_latency, latency_sum], axis=-1).reshape(rows, 2 * F)
    c0 = latency_c.reshape(rows, F)

    SLAB = ((2 * F + two_l + 127) // 128) * 128     # fused lane-dense output width
    grid = (N // tile_nodes,)

    def row_spec(width):
        return pl.BlockSpec((t_rows, width), lambda i: (i, 0))

    def full2d(arr):
        return pl.BlockSpec(arr.shape, lambda i: (0, 0))

    out = pl.pallas_call(
        _decoder_kernel,
        out_shape=jax.ShapeDtypeStruct((rows, SLAB), jnp.float32),
        grid=grid,
        in_specs=[
            row_spec(2 * F),                                              # [x | h_sum]
            row_spec(F),                                                  # latency_c
            pl.BlockSpec((tile_nodes, two_l, two_l), lambda i: (i, 0, 0)),  # op block-diag
            full2d(w_xh),
            full2d(b_iou),
            full2d(w_muv),
            full2d(b_muv),
        ],
        out_specs=row_spec(SLAB),
        compiler_params=pltpu.CompilerParams(
            dimension_semantics=("parallel",),
            # Explicit VMEM budget: leaves headroom under v7x's 64 MiB physical;
            # raise alongside tile_nodes if the per-tile footprint grows.
            vmem_limit_bytes=32 * 1024 * 1024),
    )(xh, c0, wbd, w_xh, b_iou, w_muv, b_muv)

    h = out[:, :F].reshape(N, nz, F)
    c_new = out[:, F:2 * F].reshape(N, nz, F)
    mu = out[:, 2 * F:2 * F + L].reshape(N, nz, L)
    logvar = out[:, 2 * F + L:2 * F + two_l].reshape(N, nz, L)
    return mu, logvar, h, c_new


def _reference(z, hsum, c0, op_id, params):
    N, nz, F = z.shape
    L = params["w_mu"].shape[1]
    x2 = z.reshape(N * nz, F)
    hs2 = hsum.reshape(N * nz, F)
    c2 = c0.reshape(N * nz, F)
    iou = x2 @ params["w_iou"] + hs2 @ params["u_iou"] + params["b_iou"]
    i = jax.nn.sigmoid(iou[:, :F])
    o = jax.nn.sigmoid(iou[:, F:2 * F])
    u = jnp.tanh(iou[:, 2 * F:])
    c_new = i * u + c2
    h = o * jnp.tanh(c_new)
    mu0 = (h @ params["w_mu"] + params["b_mu"]).reshape(N, nz, L)
    lv0 = (h @ params["w_lv"] + params["b_lv"]).reshape(N, nz, L)
    wop = params["op_emb"][op_id].reshape(N, L, 2 * L)
    mu = jnp.einsum("nkl,nlm->nkm", mu0, wop[:, :, :L])
    lv = jnp.einsum("nkl,nlm->nkm", lv0, wop[:, :, L:])
    return mu, lv, h.reshape(N, nz, F), c_new.reshape(N, nz, F)


def make_params(key, F, L, op_cnt):
    ks = jax.random.split(key, 8)
    return {
        "w_iou": 0.1 * jax.random.normal(ks[0], (F, 3 * F), jnp.float32),
        "u_iou": 0.1 * jax.random.normal(ks[1], (F, 3 * F), jnp.float32),
        "b_iou": 0.1 * jax.random.normal(ks[2], (1, 3 * F), jnp.float32),
        "w_mu":  0.1 * jax.random.normal(ks[3], (F, L), jnp.float32),
        "b_mu":  0.1 * jax.random.normal(ks[4], (1, L), jnp.float32),
        "w_lv":  0.1 * jax.random.normal(ks[5], (F, L), jnp.float32),
        "b_lv":  0.1 * jax.random.normal(ks[6], (1, L), jnp.float32),
        "op_emb": 0.1 * jax.random.normal(ks[7], (op_cnt + 1, 2 * L * L), jnp.float32),
    }


if __name__ == "__main__":
    # N = 16 graph nodes, nz = 4 latent samples,
    # F = latency_feature_size = 32, L = latency_feature_length = 8,
    # operation_cnt = 10
    N, nz, F, L, OP_CNT = 16, 4, 32, 8, 10

    key = jax.random.PRNGKey(0)
    k1, k2, k3, k4, kp = jax.random.split(key, 5)

    z_latency = jax.random.normal(k1, (N, nz, F), jnp.float32)
    latency_sum = jax.random.normal(k2, (N, nz, F), jnp.float32)   # g.ndata['latency_sum']
    latency_c = jax.random.normal(k3, (N, nz, F), jnp.float32)     # g.ndata['latency_c']
    operation_id = jax.random.randint(k4, (N,), 0, OP_CNT + 1, jnp.int32)

    params = make_params(kp, F, L, OP_CNT)

    mu, logvar, h, new_c = tree_lstm_latency_decoder(
        z_latency, latency_sum, latency_c, operation_id, params)
    jax.block_until_ready((mu, logvar, h, new_c))

    mu_r, lv_r, h_r, c_r = _reference(z_latency, latency_sum, latency_c,
                                      operation_id, params)
    assert jnp.allclose(mu, mu_r, rtol=1e-4, atol=1e-4)
    assert jnp.allclose(logvar, lv_r, rtol=1e-4, atol=1e-4)
    assert jnp.allclose(h, h_r, rtol=1e-4, atol=1e-4)
    assert jnp.allclose(new_c, c_r, rtol=1e-4, atol=1e-4)

    print("KERNEL_OK")
</pallas_src>

<mosaic_0001>
module attributes {stable_mosaic.version = 11 : i64} {
  func.func @_decoder_kernel(%arg0: i32, %arg1: memref<64x64xf32, #tpu.memory_space<vmem>>, %arg2: memref<64x32xf32, #tpu.memory_space<vmem>>, %arg3: memref<16x16x16xf32, #tpu.memory_space<vmem>>, %arg4: memref<64x128xf32, #tpu.memory_space<vmem>>, %arg5: memref<1x128xf32, #tpu.memory_space<vmem>>, %arg6: memref<32x16xf32, #tpu.memory_space<vmem>>, %arg7: memref<1x16xf32, #tpu.memory_space<vmem>>, %arg8: memref<64x128xf32, #tpu.memory_space<vmem>>) attributes {dimension_semantics = [#tpu.dimension_semantics<parallel>], iteration_bounds = array<i64: 1>, scalar_prefetch = 0 : i64, scratch_operands = 0 : i64, tpu.core_type = #tpu.core_type<tc>, window_params = [{transform_indices = @transform_0, window_bounds = array<i64: 64, 64>}, {transform_indices = @transform_1, window_bounds = array<i64: 64, 32>}, {transform_indices = @transform_2, window_bounds = array<i64: 16, 16, 16>}, {pipeline_mode = #tpu.pipeline_mode<synchronous>, transform_indices = @transform_3, window_bounds = array<i64: 64, 128>}, {pipeline_mode = #tpu.pipeline_mode<synchronous>, transform_indices = @transform_4, window_bounds = array<i64: 1, 128>}, {pipeline_mode = #tpu.pipeline_mode<synchronous>, transform_indices = @transform_5, window_bounds = array<i64: 32, 16>}, {pipeline_mode = #tpu.pipeline_mode<synchronous>, transform_indices = @transform_6, window_bounds = array<i64: 1, 16>}, {transform_indices = @transform_7, window_bounds = array<i64: 64, 128>}]} {
    %c0 = arith.constant 0 : index
    %c0_0 = arith.constant 0 : index
    %0 = vector.load %arg1[%c0, %c0_0] : memref<64x64xf32, #tpu.memory_space<vmem>>, vector<64x64xf32>
    %c0_1 = arith.constant 0 : index
    %c0_2 = arith.constant 0 : index
    %1 = vector.load %arg2[%c0_1, %c0_2] : memref<64x32xf32, #tpu.memory_space<vmem>>, vector<64x32xf32>
    %c0_3 = arith.constant 0 : index
    %c0_4 = arith.constant 0 : index
    %2 = vector.load %arg4[%c0_3, %c0_4] : memref<64x128xf32, #tpu.memory_space<vmem>>, vector<64x128xf32>
    %cst = arith.constant dense<0.000000e+00> : vector<64x128xf32>
    %3 = tpu.matmul %0, %2, %cst {dimension_numbers = #tpu.dot_dimension_numbers<[1], [0], [0], [1], [0, 0, 1, 1], [], []>} : vector<64x64xf32>, vector<64x128xf32>, vector<64x128xf32> -> vector<64x128xf32>
    %c0_5 = arith.constant 0 : index
    %c0_6 = arith.constant 0 : index
    %4 = vector.load %arg5[%c0_5, %c0_6] : memref<1x128xf32, #tpu.memory_space<vmem>>, vector<1x128xf32>
    %5 = vector.broadcast %4 : vector<1x128xf32> to vector<64x128xf32>
    %6 = arith.addf %3, %5 : vector<64x128xf32>
    %7 = vector.extract_strided_slice %6 {offsets = [0, 0], sizes = [64, 32], strides = [1, 1]} : vector<64x128xf32> to vector<64x32xf32>
    %8 = arith.negf %7 : vector<64x32xf32>
    %9 = math.exp %8 : vector<64x32xf32>
    %cst_7 = arith.constant 1.000000e+00 : f32
    %10 = vector.broadcast %cst_7 : f32 to vector<64x32xf32>
    %11 = arith.addf %10, %9 : vector<64x32xf32>
    %12 = arith.divf %10, %11 : vector<64x32xf32>
    %13 = vector.extract_strided_slice %6 {offsets = [0, 32], sizes = [64, 32], strides = [1, 1]} : vector<64x128xf32> to vector<64x32xf32>
    %14 = arith.negf %13 : vector<64x32xf32>
    %15 = math.exp %14 : vector<64x32xf32>
    %cst_8 = arith.constant 1.000000e+00 : f32
    %16 = vector.broadcast %cst_8 : f32 to vector<64x32xf32>
    %17 = arith.addf %16, %15 : vector<64x32xf32>
    %18 = arith.divf %16, %17 : vector<64x32xf32>
    %19 = vector.extract_strided_slice %6 {offsets = [0, 64], sizes = [64, 32], strides = [1, 1]} : vector<64x128xf32> to vector<64x32xf32>
    %20 = math.tanh %19 : vector<64x32xf32>
    %21 = arith.mulf %12, %20 : vector<64x32xf32>
    %22 = arith.addf %21, %1 : vector<64x32xf32>
    %23 = math.tanh %22 : vector<64x32xf32>
    %24 = arith.mulf %18, %23 : vector<64x32xf32>
    %c0_9 = arith.constant 0 : index
    %c0_10 = arith.constant 0 : index
    %25 = vector.load %arg6[%c0_9, %c0_10] : memref<32x16xf32, #tpu.memory_space<vmem>>, vector<32x16xf32>
    %cst_11 = arith.constant dense<0.000000e+00> : vector<64x16xf32>
    %26 = tpu.matmul %24, %25, %cst_11 {dimension_numbers = #tpu.dot_dimension_numbers<[1], [0], [0], [1], [0, 0, 1, 1], [], []>} : vector<64x32xf32>, vector<32x16xf32>, vector<64x16xf32> -> vector<64x16xf32>
    %c0_12 = arith.constant 0 : index
    %c0_13 = arith.constant 0 : index
    %27 = vector.load %arg7[%c0_12, %c0_13] : memref<1x16xf32, #tpu.memory_space<vmem>>, vector<1x16xf32>
    %28 = vector.broadcast %27 : vector<1x16xf32> to vector<64x16xf32>
    %29 = arith.addf %26, %28 : vector<64x16xf32>
    %30 = vector.shape_cast %29 : vector<64x16xf32> to vector<16x4x16xf32>
    %c0_14 = arith.constant 0 : index
    %c0_15 = arith.constant 0 : index
    %c0_16 = arith.constant 0 : index
    %31 = vector.load %arg3[%c0_14, %c0_15, %c0_16] : memref<16x16x16xf32, #tpu.memory_space<vmem>>, vector<16x16x16xf32>
    "tpu.trace_start"() <{level = 10 : i32, message = "nkl,nlm->nkm"}> : () -> ()
    %cst_17 = arith.constant dense<0.000000e+00> : vector<16x4x16xf32>
    %32 = tpu.matmul %30, %31, %cst_17 {dimension_numbers = #tpu.dot_dimension_numbers<[2], [1], [1], [2], [0, 0, 0, 1, 1, 2], [0], [0]>} : vector<16x4x16xf32>, vector<16x16x16xf32>, vector<16x4x16xf32> -> vector<16x4x16xf32>
    "tpu.trace_stop"() : () -> ()
    %33 = vector.shape_cast %32 : vector<16x4x16xf32> to vector<64x16xf32>
    %c0_18 = arith.constant 0 : index
    %c0_19 = arith.constant 0 : index
    %34 = vector.load %arg8[%c0_18, %c0_19] : memref<64x128xf32, #tpu.memory_space<vmem>>, vector<64x32xf32>
    tpu.vector_store %arg8[%c0_18, %c0_19], %24 {strides = array<i32>} : memref<64x128xf32, #tpu.memory_space<vmem>>, vector<64x32xf32>,
    %c0_20 = arith.constant 0 : index
    %c32 = arith.constant 32 : index
    %35 = vector.load %arg8[%c0_20, %c32] : memref<64x128xf32, #tpu.memory_space<vmem>>, vector<64x32xf32>
    tpu.vector_store %arg8[%c0_20, %c32], %22 {strides = array<i32>} : memref<64x128xf32, #tpu.memory_space<vmem>>, vector<64x32xf32>,
    %c0_21 = arith.constant 0 : index
    %c64 = arith.constant 64 : index
    %36 = vector.load %arg8[%c0_21, %c64] : memref<64x128xf32, #tpu.memory_space<vmem>>, vector<64x16xf32>
    tpu.vector_store %arg8[%c0_21, %c64], %33 {strides = array<i32>} : memref<64x128xf32, #tpu.memory_space<vmem>>, vector<64x16xf32>,
    %cst_22 = arith.constant 0.000000e+00 : f32
    %37 = vector.broadcast %cst_22 : f32 to vector<64x48xf32>
    %c0_23 = arith.constant 0 : index
    %c80 = arith.constant 80 : index
    %38 = vector.load %arg8[%c0_23, %c80] : memref<64x128xf32, #tpu.memory_space<vmem>>, vector<64x48xf32>
    tpu.vector_store %arg8[%c0_23, %c80], %37 {strides = array<i32>} : memref<64x128xf32, #tpu.memory_space<vmem>>, vector<64x48xf32>,
    return
  }
  func.func @transform_0(%arg0: i32) -> (i32, i32) {
    %c0_i32 = arith.constant 0 : i32
    %c0_i32_0 = arith.constant 0 : i32
    return %arg0, %c0_i32 : i32, i32
  }
  func.func @transform_1(%arg0: i32) -> (i32, i32) {
    %c0_i32 = arith.constant 0 : i32
    %c0_i32_0 = arith.constant 0 : i32
    return %arg0, %c0_i32 : i32, i32
  }
  func.func @transform_2(%arg0: i32) -> (i32, i32, i32) {
    %c0_i32 = arith.constant 0 : i32
    %c0_i32_0 = arith.constant 0 : i32
    %c0_i32_1 = arith.constant 0 : i32
    return %arg0, %c0_i32, %c0_i32_0 : i32, i32, i32
  }
  func.func @transform_3(%arg0: i32) -> (i32, i32) {
    %c0_i32 = arith.constant 0 : i32
    %c0_i32_0 = arith.constant 0 : i32
    %c0_i32_1 = arith.constant 0 : i32
    return %c0_i32, %c0_i32_0 : i32, i32
  }
  func.func @transform_4(%arg0: i32) -> (i32, i32) {
    %c0_i32 = arith.constant 0 : i32
    %c0_i32_0 = arith.constant 0 : i32
    %c0_i32_1 = arith.constant 0 : i32
    return %c0_i32, %c0_i32_0 : i32, i32
  }
  func.func @transform_5(%arg0: i32) -> (i32, i32) {
    %c0_i32 = arith.constant 0 : i32
    %c0_i32_0 = arith.constant 0 : i32
    %c0_i32_1 = arith.constant 0 : i32
    return %c0_i32, %c0_i32_0 : i32, i32
  }
  func.func @transform_6(%arg0: i32) -> (i32, i32) {
    %c0_i32 = arith.constant 0 : i32
    %c0_i32_0 = arith.constant 0 : i32
    %c0_i32_1 = arith.constant 0 : i32
    return %c0_i32, %c0_i32_0 : i32, i32
  }
  func.func @transform_7(%arg0: i32) -> (i32, i32) {
    %c0_i32 = arith.constant 0 : i32
    %c0_i32_0 = arith.constant 0 : i32
    return %arg0, %c0_i32 : i32, i32
  }
}

</mosaic_0001>

<llo_original>
// kernel: tpu_custom_call.1
$region0: #{tpu_custom_call.1}
  #allocation0 [shape = 'u32[]', space=smem, size = 0x4, offset = 0x4, fixed_abs, tag = 'smem constant byte address 0x4 - core index']
  #allocation1 [shape = 'u32[144,128]{1,0:T(1,128)}', space=vmem, size = 0x12000, scoped, tag = 'internal scratch']
  %s0 = inlined_call_operand.vmem [shape: f32[64,64], index: 0, kind: input, shape index: {}]
  %s1 = inlined_call_operand.vmem [shape: f32[64,32], index: 1, kind: input, shape index: {}]
  %s2 = inlined_call_operand.hbm [shape: f32[16,16,16], index: 2, kind: input, shape index: {}]
  %s3 = inlined_call_operand.vmem [shape: f32[64,128], index: 3, kind: input, shape index: {}]
  %s4 = inlined_call_operand.vmem [shape: f32[1,128], index: 4, kind: input, shape index: {}]
  %s5 = inlined_call_operand.vmem [shape: f32[32,16], index: 5, kind: input, shape index: {}]
  %s6 = inlined_call_operand.vmem [shape: f32[1,16], index: 6, kind: input, shape index: {}]
  %s7 = inlined_call_operand.hbm [shape: f32[64,128], index: 7, kind: output, shape index: {}]
  %s8 = sld [smem:[#allocation0]]
  $region42: #{tpu_custom_call.1} parent=0
    _
  %s10 = ssub.s32 1, %s8
  %s11 = scalar_select 0, %s10, %s8
  $region1: #{tpu_custom_call.1} parent=0
    #allocation2 [shape = 'u8[131072]{0}', space=vmem, size = 0x20000, scoped, tag = 'input window, operand 2, single buffered']
    #allocation3 [shape = 's32[1]{0}', space=sflag, size = 0x4, scoped, tag = 'scoped memory for tpu_custom_call.1']
    #allocation4 [shape = 's32[1]{0}', space=sflag, size = 0x4, scoped, tag = 'scoped memory for tpu_custom_call.1']
    #allocation5 [shape = 'u8[32768]{0}', space=vmem, size = 0x8000, scoped, tag = 'output window, operand 0, single buffered']
    %12 = vsyncpa [#allocation3], 0
    %13 = vsyncpa [#allocation4], 0
    // Predicated region
    $region2: #{tpu_custom_call.1} parent=1 // pred_check
      _
    $region3: #{tpu_custom_call.1} parent=1 // pred_check_branch
      %15 = sbr.rel (0) target = $region5
    $region4: #{tpu_custom_call.1} parent=1 // pred_region
      _
    $region5: #{tpu_custom_call.1} parent=1 // pred_fallthru
      _
    // Predicated region
    $region6: #{tpu_custom_call.1} parent=1 // pred_check
      _
    $region7: #{tpu_custom_call.1} parent=1 // pred_check_branch
      %17 = sbr.rel (0) target = $region9
    $region8: #{tpu_custom_call.1} parent=1 // pred_region
      _
    $region9: #{tpu_custom_call.1} parent=1 // pred_fallthru
      _
    // Predicated region
    $region10: #{tpu_custom_call.1} parent=1 // pred_check
      _
    $region11: #{tpu_custom_call.1} parent=1 // pred_check_branch
      %19 = sbr.rel (0) target = $region13
    $region12: #{tpu_custom_call.1} parent=1 // pred_region
      %s21 = ssub.s32 4096, 4096
      %22 = vsyncadd [#allocation3], %s21
      %s23 = sshll.u32 [#allocation2], 4
      %s24 = int_to_ptr.vmem [resolvable:$true] %s23
      %29 = dma.hbm_to_vmem [thread:$0]  %s2, 4096, %s24, [#allocation3], 128, 128, 8
    $region13: #{tpu_custom_call.1} parent=1 // pred_fallthru
      _
    // Predicated region
    $region14: #{tpu_custom_call.1} parent=1 // pred_check
      _
    $region15: #{tpu_custom_call.1} parent=1 // pred_check_branch
      %31 = sbr.rel (0) target = $region17
    $region16: #{tpu_custom_call.1} parent=1 // pred_region
      _
    $region17: #{tpu_custom_call.1} parent=1 // pred_fallthru
      _
    // Predicated region
    $region18: #{tpu_custom_call.1} parent=1 // pred_check
      _
    $region19: #{tpu_custom_call.1} parent=1 // pred_check_branch
      %33 = sbr.rel (0) target = $region21
    $region20: #{tpu_custom_call.1} parent=1 // pred_region
      _
    $region21: #{tpu_custom_call.1} parent=1 // pred_fallthru
      _
    // Predicated region
    $region22: #{tpu_custom_call.1} parent=1 // pred_check
      _
    $region23: #{tpu_custom_call.1} parent=1 // pred_check_branch
      %35 = sbr.rel (0) target = $region25
    $region24: #{tpu_custom_call.1} parent=1 // pred_region
      _
    $region25: #{tpu_custom_call.1} parent=1 // pred_fallthru
      _
    // Predicated region
    $region26: #{tpu_custom_call.1} parent=1 // pred_check
      _
    $region27: #{tpu_custom_call.1} parent=1 // pred_check_branch
      %37 = sbr.rel (0) target = $region29
    $region28: #{tpu_custom_call.1} parent=1 // pred_region
      _
    $region29: #{tpu_custom_call.1} parent=1 // pred_fallthru
      _
    // Predicated region
    $region30: #{tpu_custom_call.1} parent=1 // pred_check
      _
    $region31: #{tpu_custom_call.1} parent=1 // pred_check_branch
      %39 = sbr.rel (0) target = $region33
    $region32: #{tpu_custom_call.1} parent=1 // pred_region
      %40 = dma.done [#allocation3], 4096
    $region33: #{tpu_custom_call.1} parent=1 // pred_fallthru
      _
    %v41 = vld [vmem:[%s0] sm:$0xff]
    %v42 = vld [vmem:[%s0 + $0x8] sm:$0xff]
    %v43 = vld [vmem:[%s0 + $0x10] sm:$0xff]
    %v44 = vld [vmem:[%s0 + $0x18] sm:$0xff]
    %v45 = vld [vmem:[%s0 + $0x20] sm:$0xff]
    %v46 = vld [vmem:[%s0 + $0x28] sm:$0xff]
    %v47 = vld [vmem:[%s0 + $0x30] sm:$0xff]
    %v48 = vld [vmem:[%s0 + $0x38] sm:$0xff]
    %v49 = vld [vmem:[%s1] sm:$0xff]
    %v50 = vld [vmem:[%s1 + $0x8] sm:$0xff]
    %v51 = vld [vmem:[%s1 + $0x10] sm:$0xff]
    %v52 = vld [vmem:[%s1 + $0x18] sm:$0xff]
    %v53 = vld [vmem:[%s1 + $0x20] sm:$0xff]
    %v54 = vld [vmem:[%s1 + $0x28] sm:$0xff]
    %v55 = vld [vmem:[%s1 + $0x30] sm:$0xff]
    %v56 = vld [vmem:[%s1 + $0x38] sm:$0xff]
    %v57 = vld [vmem:[%s3] sm:$0xff]
    %v58 = vld [vmem:[%s3 + $0x8] sm:$0xff]
    %v59 = vld [vmem:[%s3 + $0x10] sm:$0xff]
    %v60 = vld [vmem:[%s3 + $0x18] sm:$0xff]
    %v61 = vld [vmem:[%s3 + $0x20] sm:$0xff]
    %v62 = vld [vmem:[%s3 + $0x28] sm:$0xff]
    %v63 = vld [vmem:[%s3 + $0x30] sm:$0xff]
    %v64 = vld [vmem:[%s3 + $0x38] sm:$0xff]
    %v65 = vld [vmem:[%s4] sm:$0x1]
    %v67 = vlaneseq
    %v68 = vshrl.u32 %v67, 7
    %v69 = vsub.s32 0, %v68
    %v70 = vrot.slane %v65, %v69
    %vm72 = vcmask 523264
    %v74 = vsel %vm72, %v41, 0
    %v77 = vsel %vm72, %v42, 0
    %v80 = vsel %vm72, %v43, 0
    %v83 = vsel %vm72, %v44, 0
    %v86 = vsel %vm72, %v45, 0
    %v89 = vsel %vm72, %v46, 0
    %v92 = vsel %vm72, %v47, 0
    %v95 = vsel %vm72, %v48, 0
    %97 = vmatprep.subr.mxu0 0.0
    %98 = vmatpush1.msra.mxu0 0.0
    %99 = vmatprep.subr.mxu0 0.0
    %100 = vmatpush1.msra.mxu0 0.0
    %101 = vmatprep.subr.mxu0 0.0
    %102 = vmatpush1.msra.mxu0 0.0
    %103 = vmatprep.subr.mxu0 0.0
    %104 = vmatpush1.msra.mxu0 0.0
    %105 = vmatprep.subr.mxu0 0.0
    %106 = vmatpush1.msra.mxu0 0.0
    %107 = vmatprep.subr.mxu0 0.0
    %108 = vmatpush1.msra.mxu0 0.0
    %109 = vmatprep.subr.mxu0 0.0
    %110 = vmatpush1.msra.mxu0 0.0
    %111 = vmatprep.subr.mxu0 0.0
    %112 = vmatpush1.msra.mxu0 0.0
    %113 = vmatprep.subr.mxu0 0.0
    %114 = vmatpush1.msra.mxu0 %v64
    %115 = vmatprep.subr.mxu0 0.0
    %116 = vmatpush1.msra.mxu0 %v63
    %117 = vmatprep.subr.mxu0 0.0
    %118 = vmatpush1.msra.mxu0 %v62
    %119 = vmatprep.subr.mxu0 0.0
    %120 = vmatpush1.msra.mxu0 %v61
    %121 = vmatprep.subr.mxu0 0.0
    %122 = vmatpush1.msra.mxu0 %v60
    %123 = vmatprep.subr.mxu0 0.0
    %124 = vmatpush1.msra.mxu0 %v59
    %125 = vmatprep.subr.mxu0 0.0
    %126 = vmatpush1.msra.mxu0 %v58
    %127 = vmatprep.subr.mxu0 0.0
    %128 = vmatpush1.msra.mxu0 %v57
    %129 = vmatprep.subr.mxu0 0.0
    %130 = vmatpush2.msra.mxu0 0.0
    %131 = vmatprep.subr.mxu0 0.0
    %132 = vmatpush2.msra.mxu0 0.0
    %133 = vmatprep.subr.mxu0 0.0
    %134 = vmatpush2.msra.mxu0 0.0
    %135 = vmatprep.subr.mxu0 0.0
    %136 = vmatpush2.msra.mxu0 0.0
    %137 = vmatprep.subr.mxu0 0.0
    %138 = vmatpush2.msra.mxu0 0.0
    %139 = vmatprep.subr.mxu0 0.0
    %140 = vmatpush2.msra.mxu0 0.0
    %141 = vmatprep.subr.mxu0 0.0
    %142 = vmatpush2.msra.mxu0 0.0
    %143 = vmatprep.subr.mxu0 0.0
    %144 = vmatpush2.msra.mxu0 0.0
    %145 = vmatprep.subr.mxu0 0.0
    %146 = vmatpush2.msra.mxu0 0.0
    %147 = vmatprep.subr.mxu0 0.0
    %148 = vmatpush2.msra.mxu0 0.0
    %149 = vmatprep.subr.mxu0 0.0
    %150 = vmatpush2.msra.mxu0 0.0
    %151 = vmatprep.subr.mxu0 0.0
    %152 = vmatpush2.msra.mxu0 0.0
    %153 = vmatprep.subr.mxu0 0.0
    %154 = vmatpush2.msra.mxu0 0.0
    %155 = vmatprep.subr.mxu0 0.0
    %156 = vmatpush2.msra.mxu0 0.0
    %157 = vmatprep.subr.mxu0 0.0
    %158 = vmatpush2.msra.mxu0 0.0
    %159 = vmatprep.subr.mxu0 0.0
    %160 = vmatpush2.msra.mxu0 0.0
    %161 = vmatprep.mubr.f32.mxu0 0.0
    %162 = vmatmul.mubr.f32.gmra.mxu0 %v74
    %v163 = vpop.f32.mrf.mxu0
    %v164 = vadd.f32 %v70, %v163
    %v165 = vpop.f32.mrf.mxu0
    %166 = vmatprep.mubr.f32.mxu0 0.0
    %167 = vmatmul.mubr.f32.gmra.mxu0 %v77
    %v168 = vpop.f32.mrf.mxu0
    %v169 = vadd.f32 %v70, %v168
    %v170 = vpop.f32.mrf.mxu0
    %171 = vmatprep.mubr.f32.mxu0 0.0
    %172 = vmatmul.mubr.f32.gmra.mxu0 %v80
    %v173 = vpop.f32.mrf.mxu0
    %v174 = vadd.f32 %v70, %v173
    %v175 = vpop.f32.mrf.mxu0
    %176 = vmatprep.mubr.f32.mxu0 0.0
    %177 = vmatmul.mubr.f32.gmra.mxu0 %v83
    %v178 = vpop.f32.mrf.mxu0
    %v179 = vadd.f32 %v70, %v178
    %v180 = vpop.f32.mrf.mxu0
    %181 = vmatprep.mubr.f32.mxu0 0.0
    %182 = vmatmul.mubr.f32.gmra.mxu0 %v86
    %v183 = vpop.f32.mrf.mxu0
    %v184 = vadd.f32 %v70, %v183
    %v185 = vpop.f32.mrf.mxu0
    %186 = vmatprep.mubr.f32.mxu0 0.0
    %187 = vmatmul.mubr.f32.gmra.mxu0 %v89
    %v188 = vpop.f32.mrf.mxu0
    %v189 = vadd.f32 %v70, %v188
    %v190 = vpop.f32.mrf.mxu0
    %191 = vmatprep.mubr.f32.mxu0 0.0
    %192 = vmatmul.mubr.f32.gmra.mxu0 %v92
    %v193 = vpop.f32.mrf.mxu0
    %v194 = vadd.f32 %v70, %v193
    %v195 = vpop.f32.mrf.mxu0
    %196 = vmatprep.mubr.f32.mxu0 0.0
    %197 = vmatmul.mubr.f32.gmra.mxu0 %v95
    %v198 = vpop.f32.mrf.mxu0
    %v199 = vadd.f32 %v70, %v198
    %v200 = vpop.f32.mrf.mxu0
    %201 = vdwg.mxu0
    %v202 = vxor.u32 %v164, 2147483648
    %v203 = vxor.u32 %v169, 2147483648
    %v204 = vxor.u32 %v174, 2147483648
    %v205 = vxor.u32 %v179, 2147483648
    %v206 = vxor.u32 %v184, 2147483648
    %v207 = vxor.u32 %v189, 2147483648
    %v208 = vxor.u32 %v194, 2147483648
    %v209 = vxor.u32 %v199, 2147483648
    %v210 = vmul.f32 %v202, 1.442695
    %v211 = vpow.pop %v210
    %v212 = vmul.f32 %v203, 1.442695
    %v213 = vpow.pop %v212
    %v214 = vmul.f32 %v204, 1.442695
    %v215 = vpow.pop %v214
    %v216 = vmul.f32 %v205, 1.442695
    %v217 = vpow.pop %v216
    %v218 = vmul.f32 %v206, 1.442695
    %v219 = vpow.pop %v218
    %v220 = vmul.f32 %v207, 1.442695
    %v221 = vpow.pop %v220
    %v222 = vmul.f32 %v208, 1.442695
    %v223 = vpow.pop %v222
    %v224 = vmul.f32 %v209, 1.442695
    %v225 = vpow.pop %v224
    %v226 = vadd.f32 %v211, 1.0
    %v227 = vadd.f32 %v213, 1.0
    %v228 = vadd.f32 %v215, 1.0
    %v229 = vadd.f32 %v217, 1.0
    %v230 = vadd.f32 %v219, 1.0
    %v231 = vadd.f32 %v221, 1.0
    %v232 = vadd.f32 %v223, 1.0
    %v233 = vadd.f32 %v225, 1.0
    %v234 = vrcp.pop %v226
    %v235 = vmul.f32 1.0, %v234
    %v236 = vrcp.pop %v227
    %v237 = vmul.f32 1.0, %v236
    %v238 = vrcp.pop %v228
    %v239 = vmul.f32 1.0, %v238
    %v240 = vrcp.pop %v229
    %v241 = vmul.f32 1.0, %v240
    %v242 = vrcp.pop %v230
    %v243 = vmul.f32 1.0, %v242
    %v244 = vrcp.pop %v231
    %v245 = vmul.f32 1.0, %v244
    %v246 = vrcp.pop %v232
    %v247 = vmul.f32 1.0, %v246
    %v248 = vrcp.pop %v233
    %v249 = vmul.f32 1.0, %v248
    %v250 = vtanh.pop %v164
    %v251 = vtanh.pop %v169
    %v252 = vtanh.pop %v174
    %v253 = vtanh.pop %v179
    %v254 = vtanh.pop %v184
    %v255 = vtanh.pop %v189
    %v256 = vtanh.pop %v194
    %v257 = vtanh.pop %v199
    %266 = vrot.lane.b32.xlu0 %v250, 64
    %v267 = vpop.permute.xlu0 %266
    %268 = vrot.lane.b32.xlu0 %v251, 64
    %v269 = vpop.permute.xlu0 %268
    %270 = vrot.lane.b32.xlu0 %v252, 64
    %v271 = vpop.permute.xlu0 %270
    %272 = vrot.lane.b32.xlu0 %v253, 64
    %v273 = vpop.permute.xlu0 %272
    %274 = vrot.lane.b32.xlu0 %v254, 64
    %v275 = vpop.permute.xlu0 %274
    %276 = vrot.lane.b32.xlu0 %v255, 64
    %v277 = vpop.permute.xlu0 %276
    %278 = vrot.lane.b32.xlu0 %v256, 64
    %v279 = vpop.permute.xlu0 %278
    %280 = vrot.lane.b32.xlu0 %v257, 64
    %v281 = vpop.permute.xlu0 %280
    %v290 = vmul.f32 %v235, %v267
    %v291 = vmul.f32 %v237, %v269
    %v292 = vmul.f32 %v239, %v271
    %v293 = vmul.f32 %v241, %v273
    %v294 = vmul.f32 %v243, %v275
    %v295 = vmul.f32 %v245, %v277
    %v296 = vmul.f32 %v247, %v279
    %v297 = vmul.f32 %v249, %v281
    %v298 = vadd.f32 %v290, %v49
    %v299 = vadd.f32 %v291, %v50
    %v300 = vadd.f32 %v292, %v51
    %v301 = vadd.f32 %v293, %v52
    %v302 = vadd.f32 %v294, %v53
    %v303 = vadd.f32 %v295, %v54
    %v304 = vadd.f32 %v296, %v55
    %v305 = vadd.f32 %v297, %v56
    %v306 = vtanh.pop %v298
    %v307 = vtanh.pop %v299
    %v308 = vtanh.pop %v300
    %v309 = vtanh.pop %v301
    %v310 = vtanh.pop %v302
    %v311 = vtanh.pop %v303
    %v312 = vtanh.pop %v304
    %v313 = vtanh.pop %v305
    %322 = vrot.lane.b32.xlu0 %v306, 32
    %v323 = vpop.permute.xlu0 %322
    %324 = vrot.lane.b32.xlu0 %v307, 32
    %v325 = vpop.permute.xlu0 %324
    %326 = vrot.lane.b32.xlu0 %v308, 32
    %v327 = vpop.permute.xlu0 %326
    %328 = vrot.lane.b32.xlu0 %v309, 32
    %v329 = vpop.permute.xlu0 %328
    %330 = vrot.lane.b32.xlu0 %v310, 32
    %v331 = vpop.permute.xlu0 %330
    %332 = vrot.lane.b32.xlu0 %v311, 32
    %v333 = vpop.permute.xlu0 %332
    %334 = vrot.lane.b32.xlu0 %v312, 32
    %v335 = vpop.permute.xlu0 %334
    %336 = vrot.lane.b32.xlu0 %v313, 32
    %v337 = vpop.permute.xlu0 %336
    %v346 = vmul.f32 %v235, %v323
    %v347 = vmul.f32 %v237, %v325
    %v348 = vmul.f32 %v239, %v327
    %v349 = vmul.f32 %v241, %v329
    %v350 = vmul.f32 %v243, %v331
    %v351 = vmul.f32 %v245, %v333
    %v352 = vmul.f32 %v247, %v335
    %v353 = vmul.f32 %v249, %v337
    %v354 = vld [vmem:[%s5] sm:$0xff]
    %v355 = vld [vmem:[%s5 + $0x8] sm:$0xff]
    %v356 = vld [vmem:[%s5 + $0x10] sm:$0xff]
    %v357 = vld [vmem:[%s5 + $0x18] sm:$0xff]
    %v358 = vld [vmem:[%s6] sm:$0x1]
    %v360 = vlaneseq
    %v361 = vshrl.u32 %v360, 7
    %v362 = vsub.s32 0, %v361
    %v363 = vrot.slane %v358, %v362
    %373 = vrot.lane.b32.xlu0 %v346, 96
    %v374 = vpop.permute.xlu0 %373
    %375 = vrot.lane.b32.xlu0 %v347, 96
    %v376 = vpop.permute.xlu0 %375
    %377 = vrot.lane.b32.xlu0 %v348, 96
    %v378 = vpop.permute.xlu0 %377
    %379 = vrot.lane.b32.xlu0 %v349, 96
    %v380 = vpop.permute.xlu0 %379
    %381 = vrot.lane.b32.xlu0 %v350, 96
    %v382 = vpop.permute.xlu0 %381
    %383 = vrot.lane.b32.xlu0 %v351, 96
    %v384 = vpop.permute.xlu0 %383
    %385 = vrot.lane.b32.xlu0 %v352, 96
    %v386 = vpop.permute.xlu0 %385
    %387 = vrot.lane.b32.xlu0 %v353, 96
    %v388 = vpop.permute.xlu0 %387
    %vm389 = vcmask 261120
    %v390 = vsel %vm389, %v374, 0
    %v392 = vsel %vm389, %v376, 0
    %v394 = vsel %vm389, %v378, 0
    %v396 = vsel %vm389, %v380, 0
    %v398 = vsel %vm389, %v382, 0
    %v400 = vsel %vm389, %v384, 0
    %v402 = vsel %vm389, %v386, 0
    %v404 = vsel %vm389, %v388, 0
    %406 = vmatprep.subr.mxu0 0.0
    %407 = vmatpush1.msra.mxu0 0.0
    %408 = vmatprep.subr.mxu0 0.0
    %409 = vmatpush1.msra.mxu0 0.0
    %410 = vmatprep.subr.mxu0 0.0
    %411 = vmatpush1.msra.mxu0 0.0
    %412 = vmatprep.subr.mxu0 0.0
    %413 = vmatpush1.msra.mxu0 0.0
    %414 = vmatprep.subr.mxu0 0.0
    %415 = vmatpush1.msra.mxu0 0.0
    %416 = vmatprep.subr.mxu0 0.0
    %417 = vmatpush1.msra.mxu0 0.0
    %418 = vmatprep.subr.mxu0 0.0
    %419 = vmatpush1.msra.mxu0 0.0
    %420 = vmatprep.subr.mxu0 0.0
    %421 = vmatpush1.msra.mxu0 0.0
    %422 = vmatprep.subr.mxu0 0.0
    %423 = vmatpush1.msra.mxu0 0.0
    %424 = vmatprep.subr.mxu0 0.0
    %425 = vmatpush1.msra.mxu0 0.0
    %426 = vmatprep.subr.mxu0 0.0
    %427 = vmatpush1.msra.mxu0 0.0
    %428 = vmatprep.subr.mxu0 0.0
    %429 = vmatpush1.msra.mxu0 0.0
    %430 = vmatprep.subr.mxu0 0.0
    %431 = vmatpush1.msra.mxu0 %v357
    %432 = vmatprep.subr.mxu0 0.0
    %433 = vmatpush1.msra.mxu0 %v356
    %434 = vmatprep.subr.mxu0 0.0
    %435 = vmatpush1.msra.mxu0 %v355
    %436 = vmatprep.subr.mxu0 0.0
    %437 = vmatpush1.msra.mxu0 %v354
    %438 = vmatprep.subr.mxu0 0.0
    %439 = vmatpush2.msra.mxu0 0.0
    %440 = vmatprep.subr.mxu0 0.0
    %441 = vmatpush2.msra.mxu0 0.0
    %442 = vmatprep.subr.mxu0 0.0
    %443 = vmatpush2.msra.mxu0 0.0
    %444 = vmatprep.subr.mxu0 0.0
    %445 = vmatpush2.msra.mxu0 0.0
    %446 = vmatprep.subr.mxu0 0.0
    %447 = vmatpush2.msra.mxu0 0.0
    %448 = vmatprep.subr.mxu0 0.0
    %449 = vmatpush2.msra.mxu0 0.0
    %450 = vmatprep.subr.mxu0 0.0
    %451 = vmatpush2.msra.mxu0 0.0
    %452 = vmatprep.subr.mxu0 0.0
    %453 = vmatpush2.msra.mxu0 0.0
    %454 = vmatprep.subr.mxu0 0.0
    %455 = vmatpush2.msra.mxu0 0.0
    %456 = vmatprep.subr.mxu0 0.0
    %457 = vmatpush2.msra.mxu0 0.0
    %458 = vmatprep.subr.mxu0 0.0
    %459 = vmatpush2.msra.mxu0 0.0
    %460 = vmatprep.subr.mxu0 0.0
    %461 = vmatpush2.msra.mxu0 0.0
    %462 = vmatprep.subr.mxu0 0.0
    %463 = vmatpush2.msra.mxu0 0.0
    %464 = vmatprep.subr.mxu0 0.0
    %465 = vmatpush2.msra.mxu0 0.0
    %466 = vmatprep.subr.mxu0 0.0
    %467 = vmatpush2.msra.mxu0 0.0
    %468 = vmatprep.subr.mxu0 0.0
    %469 = vmatpush2.msra.mxu0 0.0
    %470 = vmatprep.mubr.f32.mxu0 0.0
    %471 = vmatmul.mubr.f32.gmra.mxu0 %v390
    %v472 = vpop.f32.mrf.mxu0
    %v473 = vadd.f32 %v363, %v472
    %v474 = vpop.f32.mrf.mxu0
    %475 = vmatprep.mubr.f32.mxu0 0.0
    %476 = vmatmul.mubr.f32.gmra.mxu0 %v392
    %v477 = vpop.f32.mrf.mxu0
    %v478 = vadd.f32 %v363, %v477
    %v479 = vpop.f32.mrf.mxu0
    %480 = vmatprep.mubr.f32.mxu0 0.0
    %481 = vmatmul.mubr.f32.gmra.mxu0 %v394
    %v482 = vpop.f32.mrf.mxu0
    %v483 = vadd.f32 %v363, %v482
    %v484 = vpop.f32.mrf.mxu0
    %485 = vmatprep.mubr.f32.mxu0 0.0
    %486 = vmatmul.mubr.f32.gmra.mxu0 %v396
    %v487 = vpop.f32.mrf.mxu0
    %v488 = vadd.f32 %v363, %v487
    %v489 = vpop.f32.mrf.mxu0
    %490 = vmatprep.mubr.f32.mxu0 0.0
    %491 = vmatmul.mubr.f32.gmra.mxu0 %v398
    %v492 = vpop.f32.mrf.mxu0
    %v493 = vadd.f32 %v363, %v492
    %v494 = vpop.f32.mrf.mxu0
    %495 = vmatprep.mubr.f32.mxu0 0.0
    %496 = vmatmul.mubr.f32.gmra.mxu0 %v400
    %v497 = vpop.f32.mrf.mxu0
    %v498 = vadd.f32 %v363, %v497
    %v499 = vpop.f32.mrf.mxu0
    %500 = vmatprep.mubr.f32.mxu0 0.0
    %501 = vmatmul.mubr.f32.gmra.mxu0 %v402
    %v502 = vpop.f32.mrf.mxu0
    %v503 = vadd.f32 %v363, %v502
    %v504 = vpop.f32.mrf.mxu0
    %505 = vmatprep.mubr.f32.mxu0 0.0
    %506 = vmatmul.mubr.f32.gmra.mxu0 %v404
    %v507 = vpop.f32.mrf.mxu0
    %v508 = vadd.f32 %v363, %v507
    %v509 = vpop.f32.mrf.mxu0
    %510 = vdwg.mxu0
    %v519 = vcombine.high %v473, %v473
    %v520 = vcombine.high %v478, %v478
    %v521 = vcombine.high %v483, %v483
    %v522 = vcombine.high %v488, %v488
    %v523 = vcombine.high %v493, %v493
    %v524 = vcombine.high %v498, %v498
    %v525 = vcombine.high %v503, %v503
    %v526 = vcombine.high %v508, %v508
    %v527 = vld [vmem:[#allocation2] sm:$0xff]
    %v528 = vld [vmem:[#allocation2 + $0x8] sm:$0xff]
    %v529 = vld [vmem:[#allocation2 + $0x10] sm:$0xff]
    %v530 = vld [vmem:[#allocation2 + $0x18] sm:$0xff]
    %v531 = vld [vmem:[#allocation2 + $0x20] sm:$0xff]
    %v532 = vld [vmem:[#allocation2 + $0x28] sm:$0xff]
    %v533 = vld [vmem:[#allocation2 + $0x30] sm:$0xff]
    %v534 = vld [vmem:[#allocation2 + $0x38] sm:$0xff]
    %v535 = vld [vmem:[#allocation2 + $0x40] sm:$0xff]
    %v536 = vld [vmem:[#allocation2 + $0x48] sm:$0xff]
    %v537 = vld [vmem:[#allocation2 + $0x50] sm:$0xff]
    %v538 = vld [vmem:[#allocation2 + $0x58] sm:$0xff]
    %v539 = vld [vmem:[#allocation2 + $0x60] sm:$0xff]
    %v540 = vld [vmem:[#allocation2 + $0x68] sm:$0xff]
    %v541 = vld [vmem:[#allocation2 + $0x70] sm:$0xff]
    %v542 = vld [vmem:[#allocation2 + $0x78] sm:$0xff]
    %v543 = vld [vmem:[#allocation2 + $0x80] sm:$0xff]
    %v544 = vld [vmem:[#allocation2 + $0x88] sm:$0xff]
    %v545 = vld [vmem:[#allocation2 + $0x90] sm:$0xff]
    %v546 = vld [vmem:[#allocation2 + $0x98] sm:$0xff]
    %v547 = vld [vmem:[#allocation2 + $0xa0] sm:$0xff]
    %v548 = vld [vmem:[#allocation2 + $0xa8] sm:$0xff]
    %v549 = vld [vmem:[#allocation2 + $0xb0] sm:$0xff]
    %v550 = vld [vmem:[#allocation2 + $0xb8] sm:$0xff]
    %v551 = vld [vmem:[#allocation2 + $0xc0] sm:$0xff]
    %v552 = vld [vmem:[#allocation2 + $0xc8] sm:$0xff]
    %v553 = vld [vmem:[#allocation2 + $0xd0] sm:$0xff]
    %v554 = vld [vmem:[#allocation2 + $0xd8] sm:$0xff]
    %v555 = vld [vmem:[#allocation2 + $0xe0] sm:$0xff]
    %v556 = vld [vmem:[#allocation2 + $0xe8] sm:$0xff]
    %v557 = vld [vmem:[#allocation2 + $0xf0] sm:$0xff]
    %v558 = vld [vmem:[#allocation2 + $0xf8] sm:$0xff]
    %vm559 = vcmask 130048
    %v560 = vsel %vm559, %v473, 0
    %562 = vmatprep.subr.mxu0 0.0
    %563 = vmatpush1.msra.mxu0 0.0
    %564 = vmatprep.subr.mxu0 0.0
    %565 = vmatpush1.msra.mxu0 0.0
    %566 = vmatprep.subr.mxu0 0.0
    %567 = vmatpush1.msra.mxu0 0.0
    %568 = vmatprep.subr.mxu0 0.0
    %569 = vmatpush1.msra.mxu0 0.0
    %570 = vmatprep.subr.mxu0 0.0
    %571 = vmatpush1.msra.mxu0 0.0
    %572 = vmatprep.subr.mxu0 0.0
    %573 = vmatpush1.msra.mxu0 0.0
    %574 = vmatprep.subr.mxu0 0.0
    %575 = vmatpush1.msra.mxu0 0.0
    %576 = vmatprep.subr.mxu0 0.0
    %577 = vmatpush1.msra.mxu0 0.0
    %578 = vmatprep.subr.mxu0 0.0
    %579 = vmatpush1.msra.mxu0 0.0
    %580 = vmatprep.subr.mxu0 0.0
    %581 = vmatpush1.msra.mxu0 0.0
    %582 = vmatprep.subr.mxu0 0.0
    %583 = vmatpush1.msra.mxu0 0.0
    %584 = vmatprep.subr.mxu0 0.0
    %585 = vmatpush1.msra.mxu0 0.0
    %586 = vmatprep.subr.mxu0 0.0
    %587 = vmatpush1.msra.mxu0 0.0
    %588 = vmatprep.subr.mxu0 0.0
    %589 = vmatpush1.msra.mxu0 0.0
    %590 = vmatprep.subr.mxu0 0.0
    %591 = vmatpush1.msra.mxu0 %v528
    %592 = vmatprep.subr.mxu0 0.0
    %593 = vmatpush1.msra.mxu0 %v527
    %594 = vmatprep.subr.mxu0 0.0
    %595 = vmatpush2.msra.mxu0 0.0
    %596 = vmatprep.subr.mxu0 0.0
    %597 = vmatpush2.msra.mxu0 0.0
    %598 = vmatprep.subr.mxu0 0.0
    %599 = vmatpush2.msra.mxu0 0.0
    %600 = vmatprep.subr.mxu0 0.0
    %601 = vmatpush2.msra.mxu0 0.0
    %602 = vmatprep.subr.mxu0 0.0
    %603 = vmatpush2.msra.mxu0 0.0
    %604 = vmatprep.subr.mxu0 0.0
    %605 = vmatpush2.msra.mxu0 0.0
    %606 = vmatprep.subr.mxu0 0.0
    %607 = vmatpush2.msra.mxu0 0.0
    %608 = vmatprep.subr.mxu0 0.0
    %609 = vmatpush2.msra.mxu0 0.0
    %610 = vmatprep.subr.mxu0 0.0
    %611 = vmatpush2.msra.mxu0 0.0
    %612 = vmatprep.subr.mxu0 0.0
    %613 = vmatpush2.msra.mxu0 0.0
    %614 = vmatprep.subr.mxu0 0.0
    %615 = vmatpush2.msra.mxu0 0.0
    %616 = vmatprep.subr.mxu0 0.0
    %617 = vmatpush2.msra.mxu0 0.0
    %618 = vmatprep.subr.mxu0 0.0
    %619 = vmatpush2.msra.mxu0 0.0
    %620 = vmatprep.subr.mxu0 0.0
    %621 = vmatpush2.msra.mxu0 0.0
    %622 = vmatprep.subr.mxu0 0.0
    %623 = vmatpush2.msra.mxu0 0.0
    %624 = vmatprep.subr.mxu0 0.0
    %625 = vmatpush2.msra.mxu0 0.0
    %626 = vmatprep.mubr.f32.mxu0 0.0
    %627 = vmatmul.mubr.f32.gmra.mxu0 %v560
    %v628 = vpop.f32.mrf.mxu0
    %v629 = vadd.f32 0.0, %v628
    %v630 = vpop.f32.mrf.mxu0
    %631 = vdwg.mxu0
    %v632 = vsel %vm559, %v519, 0
    %634 = vmatprep.subr.mxu0 0.0
    %635 = vmatpush1.msra.mxu0 0.0
    %636 = vmatprep.subr.mxu0 0.0
    %637 = vmatpush1.msra.mxu0 0.0
    %638 = vmatprep.subr.mxu0 0.0
    %639 = vmatpush1.msra.mxu0 0.0
    %640 = vmatprep.subr.mxu0 0.0
    %641 = vmatpush1.msra.mxu0 0.0
    %642 = vmatprep.subr.mxu0 0.0
    %643 = vmatpush1.msra.mxu0 0.0
    %644 = vmatprep.subr.mxu0 0.0
    %645 = vmatpush1.msra.mxu0 0.0
    %646 = vmatprep.subr.mxu0 0.0
    %647 = vmatpush1.msra.mxu0 0.0
    %648 = vmatprep.subr.mxu0 0.0
    %649 = vmatpush1.msra.mxu0 0.0
    %650 = vmatprep.subr.mxu0 0.0
    %651 = vmatpush1.msra.mxu0 0.0
    %652 = vmatprep.subr.mxu0 0.0
    %653 = vmatpush1.msra.mxu0 0.0
    %654 = vmatprep.subr.mxu0 0.0
    %655 = vmatpush1.msra.mxu0 0.0
    %656 = vmatprep.subr.mxu0 0.0
    %657 = vmatpush1.msra.mxu0 0.0
    %658 = vmatprep.subr.mxu0 0.0
    %659 = vmatpush1.msra.mxu0 0.0
    %660 = vmatprep.subr.mxu0 0.0
    %661 = vmatpush1.msra.mxu0 0.0
    %662 = vmatprep.subr.mxu0 0.0
    %663 = vmatpush1.msra.mxu0 %v530
    %664 = vmatprep.subr.mxu0 0.0
    %665 = vmatpush1.msra.mxu0 %v529
    %666 = vmatprep.subr.mxu0 0.0
    %667 = vmatpush2.msra.mxu0 0.0
    %668 = vmatprep.subr.mxu0 0.0
    %669 = vmatpush2.msra.mxu0 0.0
    %670 = vmatprep.subr.mxu0 0.0
    %671 = vmatpush2.msra.mxu0 0.0
    %672 = vmatprep.subr.mxu0 0.0
    %673 = vmatpush2.msra.mxu0 0.0
    %674 = vmatprep.subr.mxu0 0.0
    %675 = vmatpush2.msra.mxu0 0.0
    %676 = vmatprep.subr.mxu0 0.0
    %677 = vmatpush2.msra.mxu0 0.0
    %678 = vmatprep.subr.mxu0 0.0
    %679 = vmatpush2.msra.mxu0 0.0
    %680 = vmatprep.subr.mxu0 0.0
    %681 = vmatpush2.msra.mxu0 0.0
    %682 = vmatprep.subr.mxu0 0.0
    %683 = vmatpush2.msra.mxu0 0.0
    %684 = vmatprep.subr.mxu0 0.0
    %685 = vmatpush2.msra.mxu0 0.0
    %686 = vmatprep.subr.mxu0 0.0
    %687 = vmatpush2.msra.mxu0 0.0
    %688 = vmatprep.subr.mxu0 0.0
    %689 = vmatpush2.msra.mxu0 0.0
    %690 = vmatprep.subr.mxu0 0.0
    %691 = vmatpush2.msra.mxu0 0.0
    %692 = vmatprep.subr.mxu0 0.0
    %693 = vmatpush2.msra.mxu0 0.0
    %694 = vmatprep.subr.mxu0 0.0
    %695 = vmatpush2.msra.mxu0 0.0
    %696 = vmatprep.subr.mxu0 0.0
    %697 = vmatpush2.msra.mxu0 0.0
    %698 = vmatprep.mubr.f32.mxu0 0.0
    %699 = vmatmul.mubr.f32.gmra.mxu0 %v632
    %v700 = vpop.f32.mrf.mxu0
    %v701 = vadd.f32 0.0, %v700
    %v702 = vpop.f32.mrf.mxu0
    %703 = vdwg.mxu0
    %v704 = vsel %vm559, %v478, 0
    %706 = vmatprep.subr.mxu0 0.0
    %707 = vmatpush1.msra.mxu0 0.0
    %708 = vmatprep.subr.mxu0 0.0
    %709 = vmatpush1.msra.mxu0 0.0
    %710 = vmatprep.subr.mxu0 0.0
    %711 = vmatpush1.msra.mxu0 0.0
    %712 = vmatprep.subr.mxu0 0.0
    %713 = vmatpush1.msra.mxu0 0.0
    %714 = vmatprep.subr.mxu0 0.0
    %715 = vmatpush1.msra.mxu0 0.0
    %716 = vmatprep.subr.mxu0 0.0
    %717 = vmatpush1.msra.mxu0 0.0
    %718 = vmatprep.subr.mxu0 0.0
    %719 = vmatpush1.msra.mxu0 0.0
    %720 = vmatprep.subr.mxu0 0.0
    %721 = vmatpush1.msra.mxu0 0.0
    %722 = vmatprep.subr.mxu0 0.0
    %723 = vmatpush1.msra.mxu0 0.0
    %724 = vmatprep.subr.mxu0 0.0
    %725 = vmatpush1.msra.mxu0 0.0
    %726 = vmatprep.subr.mxu0 0.0
    %727 = vmatpush1.msra.mxu0 0.0
    %728 = vmatprep.subr.mxu0 0.0
    %729 = vmatpush1.msra.mxu0 0.0
    %730 = vmatprep.subr.mxu0 0.0
    %731 = vmatpush1.msra.mxu0 0.0
    %732 = vmatprep.subr.mxu0 0.0
    %733 = vmatpush1.msra.mxu0 0.0
    %734 = vmatprep.subr.mxu0 0.0
    %735 = vmatpush1.msra.mxu0 %v532
    %736 = vmatprep.subr.mxu0 0.0
    %737 = vmatpush1.msra.mxu0 %v531
    %738 = vmatprep.subr.mxu0 0.0
    %739 = vmatpush2.msra.mxu0 0.0
    %740 = vmatprep.subr.mxu0 0.0
    %741 = vmatpush2.msra.mxu0 0.0
    %742 = vmatprep.subr.mxu0 0.0
    %743 = vmatpush2.msra.mxu0 0.0
    %744 = vmatprep.subr.mxu0 0.0
    %745 = vmatpush2.msra.mxu0 0.0
    %746 = vmatprep.subr.mxu0 0.0
    %747 = vmatpush2.msra.mxu0 0.0
    %748 = vmatprep.subr.mxu0 0.0
    %749 = vmatpush2.msra.mxu0 0.0
    %750 = vmatprep.subr.mxu0 0.0
    %751 = vmatpush2.msra.mxu0 0.0
    %752 = vmatprep.subr.mxu0 0.0
    %753 = vmatpush2.msra.mxu0 0.0
    %754 = vmatprep.subr.mxu0 0.0
    %755 = vmatpush2.msra.mxu0 0.0
    %756 = vmatprep.subr.mxu0 0.0
    %757 = vmatpush2.msra.mxu0 0.0
    %758 = vmatprep.subr.mxu0 0.0
    %759 = vmatpush2.msra.mxu0 0.0
    %760 = vmatprep.subr.mxu0 0.0
    %761 = vmatpush2.msra.mxu0 0.0
    %762 = vmatprep.subr.mxu0 0.0
    %763 = vmatpush2.msra.mxu0 0.0
    %764 = vmatprep.subr.mxu0 0.0
    %765 = vmatpush2.msra.mxu0 0.0
    %766 = vmatprep.subr.mxu0 0.0
    %767 = vmatpush2.msra.mxu0 0.0
    %768 = vmatprep.subr.mxu0 0.0
    %769 = vmatpush2.msra.mxu0 0.0
    %770 = vmatprep.mubr.f32.mxu0 0.0
    %771 = vmatmul.mubr.f32.gmra.mxu0 %v704
    %v772 = vpop.f32.mrf.mxu0
    %v773 = vadd.f32 0.0, %v772
    %v774 = vpop.f32.mrf.mxu0
    %775 = vdwg.mxu0
    %v776 = vsel %vm559, %v520, 0
    %778 = vmatprep.subr.mxu0 0.0
    %779 = vmatpush1.msra.mxu0 0.0
    %780 = vmatprep.subr.mxu0 0.0
    %781 = vmatpush1.msra.mxu0 0.0
    %782 = vmatprep.subr.mxu0 0.0
    %783 = vmatpush1.msra.mxu0 0.0
    %784 = vmatprep.subr.mxu0 0.0
    %785 = vmatpush1.msra.mxu0 0.0
    %786 = vmatprep.subr.mxu0 0.0
    %787 = vmatpush1.msra.mxu0 0.0
    %788 = vmatprep.subr.mxu0 0.0
    %789 = vmatpush1.msra.mxu0 0.0
    %790 = vmatprep.subr.mxu0 0.0
    %791 = vmatpush1.msra.mxu0 0.0
    %792 = vmatprep.subr.mxu0 0.0
    %793 = vmatpush1.msra.mxu0 0.0
    %794 = vmatprep.subr.mxu0 0.0
    %795 = vmatpush1.msra.mxu0 0.0
    %796 = vmatprep.subr.mxu0 0.0
    %797 = vmatpush1.msra.mxu0 0.0
    %798 = vmatprep.subr.mxu0 0.0
    %799 = vmatpush1.msra.mxu0 0.0
    %800 = vmatprep.subr.mxu0 0.0
    %801 = vmatpush1.msra.mxu0 0.0
    %802 = vmatprep.subr.mxu0 0.0
    %803 = vmatpush1.msra.mxu0 0.0
    %804 = vmatprep.subr.mxu0 0.0
    %805 = vmatpush1.msra.mxu0 0.0
    %806 = vmatprep.subr.mxu0 0.0
    %807 = vmatpush1.msra.mxu0 %v534
    %808 = vmatprep.subr.mxu0 0.0
    %809 = vmatpush1.msra.mxu0 %v533
    %810 = vmatprep.subr.mxu0 0.0
    %811 = vmatpush2.msra.mxu0 0.0
    %812 = vmatprep.subr.mxu0 0.0
    %813 = vmatpush2.msra.mxu0 0.0
    %814 = vmatprep.subr.mxu0 0.0
    %815 = vmatpush2.msra.mxu0 0.0
    %816 = vmatprep.subr.mxu0 0.0
    %817 = vmatpush2.msra.mxu0 0.0
    %818 = vmatprep.subr.mxu0 0.0
    %819 = vmatpush2.msra.mxu0 0.0
    %820 = vmatprep.subr.mxu0 0.0
    %821 = vmatpush2.msra.mxu0 0.0
    %822 = vmatprep.subr.mxu0 0.0
    %823 = vmatpush2.msra.mxu0 0.0
    %824 = vmatprep.subr.mxu0 0.0
    %825 = vmatpush2.msra.mxu0 0.0
    %826 = vmatprep.subr.mxu0 0.0
    %827 = vmatpush2.msra.mxu0 0.0
    %828 = vmatprep.subr.mxu0 0.0
    %829 = vmatpush2.msra.mxu0 0.0
    %830 = vmatprep.subr.mxu0 0.0
    %831 = vmatpush2.msra.mxu0 0.0
    %832 = vmatprep.subr.mxu0 0.0
    %833 = vmatpush2.msra.mxu0 0.0
    %834 = vmatprep.subr.mxu0 0.0
    %835 = vmatpush2.msra.mxu0 0.0
    %836 = vmatprep.subr.mxu0 0.0
    %837 = vmatpush2.msra.mxu0 0.0
    %838 = vmatprep.subr.mxu0 0.0
    %839 = vmatpush2.msra.mxu0 0.0
    %840 = vmatprep.subr.mxu0 0.0
    %841 = vmatpush2.msra.mxu0 0.0
    %842 = vmatprep.mubr.f32.mxu0 0.0
    %843 = vmatmul.mubr.f32.gmra.mxu0 %v776
    %v844 = vpop.f32.mrf.mxu0
    %v845 = vadd.f32 0.0, %v844
    %v846 = vpop.f32.mrf.mxu0
    %847 = vdwg.mxu0
    %v848 = vsel %vm559, %v483, 0
    %850 = vmatprep.subr.mxu0 0.0
    %851 = vmatpush1.msra.mxu0 0.0
    %852 = vmatprep.subr.mxu0 0.0
    %853 = vmatpush1.msra.mxu0 0.0
    %854 = vmatprep.subr.mxu0 0.0
    %855 = vmatpush1.msra.mxu0 0.0
    %856 = vmatprep.subr.mxu0 0.0
    %857 = vmatpush1.msra.mxu0 0.0
    %858 = vmatprep.subr.mxu0 0.0
    %859 = vmatpush1.msra.mxu0 0.0
    %860 = vmatprep.subr.mxu0 0.0
    %861 = vmatpush1.msra.mxu0 0.0
    %862 = vmatprep.subr.mxu0 0.0
    %863 = vmatpush1.msra.mxu0 0.0
    %864 = vmatprep.subr.mxu0 0.0
    %865 = vmatpush1.msra.mxu0 0.0
    %866 = vmatprep.subr.mxu0 0.0
    %867 = vmatpush1.msra.mxu0 0.0
    %868 = vmatprep.subr.mxu0 0.0
    %869 = vmatpush1.msra.mxu0 0.0
    %870 = vmatprep.subr.mxu0 0.0
    %871 = vmatpush1.msra.mxu0 0.0
    %872 = vmatprep.subr.mxu0 0.0
    %873 = vmatpush1.msra.mxu0 0.0
    %874 = vmatprep.subr.mxu0 0.0
    %875 = vmatpush1.msra.mxu0 0.0
    %876 = vmatprep.subr.mxu0 0.0
    %877 = vmatpush1.msra.mxu0 0.0
    %878 = vmatprep.subr.mxu0 0.0
    %879 = vmatpush1.msra.mxu0 %v536
    %880 = vmatprep.subr.mxu0 0.0
    %881 = vmatpush1.msra.mxu0 %v535
    %882 = vmatprep.subr.mxu0 0.0
    %883 = vmatpush2.msra.mxu0 0.0
    %884 = vmatprep.subr.mxu0 0.0
    %885 = vmatpush2.msra.mxu0 0.0
    %886 = vmatprep.subr.mxu0 0.0
    %887 = vmatpush2.msra.mxu0 0.0
    %888 = vmatprep.subr.mxu0 0.0
    %889 = vmatpush2.msra.mxu0 0.0
    %890 = vmatprep.subr.mxu0 0.0
    %891 = vmatpush2.msra.mxu0 0.0
    %892 = vmatprep.subr.mxu0 0.0
    %893 = vmatpush2.msra.mxu0 0.0
    %894 = vmatprep.subr.mxu0 0.0
    %895 = vmatpush2.msra.mxu0 0.0
    %896 = vmatprep.subr.mxu0 0.0
    %897 = vmatpush2.msra.mxu0 0.0
    %898 = vmatprep.subr.mxu0 0.0
    %899 = vmatpush2.msra.mxu0 0.0
    %900 = vmatprep.subr.mxu0 0.0
    %901 = vmatpush2.msra.mxu0 0.0
    %902 = vmatprep.subr.mxu0 0.0
    %903 = vmatpush2.msra.mxu0 0.0
    %904 = vmatprep.subr.mxu0 0.0
    %905 = vmatpush2.msra.mxu0 0.0
    %906 = vmatprep.subr.mxu0 0.0
    %907 = vmatpush2.msra.mxu0 0.0
    %908 = vmatprep.subr.mxu0 0.0
    %909 = vmatpush2.msra.mxu0 0.0
    %910 = vmatprep.subr.mxu0 0.0
    %911 = vmatpush2.msra.mxu0 0.0
    %912 = vmatprep.subr.mxu0 0.0
    %913 = vmatpush2.msra.mxu0 0.0
    %914 = vmatprep.mubr.f32.mxu0 0.0
    %915 = vmatmul.mubr.f32.gmra.mxu0 %v848
    %v916 = vpop.f32.mrf.mxu0
    %v917 = vadd.f32 0.0, %v916
    %v918 = vpop.f32.mrf.mxu0
    %919 = vdwg.mxu0
    %v920 = vsel %vm559, %v521, 0
    %922 = vmatprep.subr.mxu0 0.0
    %923 = vmatpush1.msra.mxu0 0.0
    %924 = vmatprep.subr.mxu0 0.0
    %925 = vmatpush1.msra.mxu0 0.0
    %926 = vmatprep.subr.mxu0 0.0
    %927 = vmatpush1.msra.mxu0 0.0
    %928 = vmatprep.subr.mxu0 0.0
    %929 = vmatpush1.msra.mxu0 0.0
    %930 = vmatprep.subr.mxu0 0.0
    %931 = vmatpush1.msra.mxu0 0.0
    %932 = vmatprep.subr.mxu0 0.0
    %933 = vmatpush1.msra.mxu0 0.0
    %934 = vmatprep.subr.mxu0 0.0
    %935 = vmatpush1.msra.mxu0 0.0
    %936 = vmatprep.subr.mxu0 0.0
    %937 = vmatpush1.msra.mxu0 0.0
    %938 = vmatprep.subr.mxu0 0.0
    %939 = vmatpush1.msra.mxu0 0.0
    %940 = vmatprep.subr.mxu0 0.0
    %941 = vmatpush1.msra.mxu0 0.0
    %942 = vmatprep.subr.mxu0 0.0
    %943 = vmatpush1.msra.mxu0 0.0
    %944 = vmatprep.subr.mxu0 0.0
    %945 = vmatpush1.msra.mxu0 0.0
    %946 = vmatprep.subr.mxu0 0.0
    %947 = vmatpush1.msra.mxu0 0.0
    %948 = vmatprep.subr.mxu0 0.0
    %949 = vmatpush1.msra.mxu0 0.0
    %950 = vmatprep.subr.mxu0 0.0
    %951 = vmatpush1.msra.mxu0 %v538
    %952 = vmatprep.subr.mxu0 0.0
    %953 = vmatpush1.msra.mxu0 %v537
    %954 = vmatprep.subr.mxu0 0.0
    %955 = vmatpush2.msra.mxu0 0.0
    %956 = vmatprep.subr.mxu0 0.0
    %957 = vmatpush2.msra.mxu0 0.0
    %958 = vmatprep.subr.mxu0 0.0
    %959 = vmatpush2.msra.mxu0 0.0
    %960 = vmatprep.subr.mxu0 0.0
    %961 = vmatpush2.msra.mxu0 0.0
    %962 = vmatprep.subr.mxu0 0.0
    %963 = vmatpush2.msra.mxu0 0.0
    %964 = vmatprep.subr.mxu0 0.0
    %965 = vmatpush2.msra.mxu0 0.0
    %966 = vmatprep.subr.mxu0 0.0
    %967 = vmatpush2.msra.mxu0 0.0
    %968 = vmatprep.subr.mxu0 0.0
    %969 = vmatpush2.msra.mxu0 0.0
    %970 = vmatprep.subr.mxu0 0.0
    %971 = vmatpush2.msra.mxu0 0.0
    %972 = vmatprep.subr.mxu0 0.0
    %973 = vmatpush2.msra.mxu0 0.0
    %974 = vmatprep.subr.mxu0 0.0
    %975 = vmatpush2.msra.mxu0 0.0
    %976 = vmatprep.subr.mxu0 0.0
    %977 = vmatpush2.msra.mxu0 0.0
    %978 = vmatprep.subr.mxu0 0.0
    %979 = vmatpush2.msra.mxu0 0.0
    %980 = vmatprep.subr.mxu0 0.0
    %981 = vmatpush2.msra.mxu0 0.0
    %982 = vmatprep.subr.mxu0 0.0
    %983 = vmatpush2.msra.mxu0 0.0
    %984 = vmatprep.subr.mxu0 0.0
    %985 = vmatpush2.msra.mxu0 0.0
    %986 = vmatprep.mubr.f32.mxu0 0.0
    %987 = vmatmul.mubr.f32.gmra.mxu0 %v920
    %v988 = vpop.f32.mrf.mxu0
    %v989 = vadd.f32 0.0, %v988
    %v990 = vpop.f32.mrf.mxu0
    %991 = vdwg.mxu0
    %v992 = vsel %vm559, %v488, 0
    %994 = vmatprep.subr.mxu0 0.0
    %995 = vmatpush1.msra.mxu0 0.0
    %996 = vmatprep.subr.mxu0 0.0
    %997 = vmatpush1.msra.mxu0 0.0
    %998 = vmatprep.subr.mxu0 0.0
    %999 = vmatpush1.msra.mxu0 0.0
    %1000 = vmatprep.subr.mxu0 0.0
    %1001 = vmatpush1.msra.mxu0 0.0
    %1002 = vmatprep.subr.mxu0 0.0
    %1003 = vmatpush1.msra.mxu0 0.0
    %1004 = vmatprep.subr.mxu0 0.0
    %1005 = vmatpush1.msra.mxu0 0.0
    %1006 = vmatprep.subr.mxu0 0.0
    %1007 = vmatpush1.msra.mxu0 0.0
    %1008 = vmatprep.subr.mxu0 0.0
    %1009 = vmatpush1.msra.mxu0 0.0
    %1010 = vmatprep.subr.mxu0 0.0
    %1011 = vmatpush1.msra.mxu0 0.0
    %1012 = vmatprep.subr.mxu0 0.0
    %1013 = vmatpush1.msra.mxu0 0.0
    %1014 = vmatprep.subr.mxu0 0.0
    %1015 = vmatpush1.msra.mxu0 0.0
    %1016 = vmatprep.subr.mxu0 0.0
    %1017 = vmatpush1.msra.mxu0 0.0
    %1018 = vmatprep.subr.mxu0 0.0
    %1019 = vmatpush1.msra.mxu0 0.0
    %1020 = vmatprep.subr.mxu0 0.0
    %1021 = vmatpush1.msra.mxu0 0.0
    %1022 = vmatprep.subr.mxu0 0.0
    %1023 = vmatpush1.msra.mxu0 %v540
    %1024 = vmatprep.subr.mxu0 0.0
    %1025 = vmatpush1.msra.mxu0 %v539
    %1026 = vmatprep.subr.mxu0 0.0
    %1027 = vmatpush2.msra.mxu0 0.0
    %1028 = vmatprep.subr.mxu0 0.0
    %1029 = vmatpush2.msra.mxu0 0.0
    %1030 = vmatprep.subr.mxu0 0.0
    %1031 = vmatpush2.msra.mxu0 0.0
    %1032 = vmatprep.subr.mxu0 0.0
    %1033 = vmatpush2.msra.mxu0 0.0
    %1034 = vmatprep.subr.mxu0 0.0
    %1035 = vmatpush2.msra.mxu0 0.0
    %1036 = vmatprep.subr.mxu0 0.0
    %1037 = vmatpush2.msra.mxu0 0.0
    %1038 = vmatprep.subr.mxu0 0.0
    %1039 = vmatpush2.msra.mxu0 0.0
    %1040 = vmatprep.subr.mxu0 0.0
    %1041 = vmatpush2.msra.mxu0 0.0
    %1042 = vmatprep.subr.mxu0 0.0
    %1043 = vmatpush2.msra.mxu0 0.0
    %1044 = vmatprep.subr.mxu0 0.0
    %1045 = vmatpush2.msra.mxu0 0.0
    %1046 = vmatprep.subr.mxu0 0.0
    %1047 = vmatpush2.msra.mxu0 0.0
    %1048 = vmatprep.subr.mxu0 0.0
    %1049 = vmatpush2.msra.mxu0 0.0
    %1050 = vmatprep.subr.mxu0 0.0
    %1051 = vmatpush2.msra.mxu0 0.0
    %1052 = vmatprep.subr.mxu0 0.0
    %1053 = vmatpush2.msra.mxu0 0.0
    %1054 = vmatprep.subr.mxu0 0.0
    %1055 = vmatpush2.msra.mxu0 0.0
    %1056 = vmatprep.subr.mxu0 0.0
    %1057 = vmatpush2.msra.mxu0 0.0
    %1058 = vmatprep.mubr.f32.mxu0 0.0
    %1059 = vmatmul.mubr.f32.gmra.mxu0 %v992
    %v1060 = vpop.f32.mrf.mxu0
    %v1061 = vadd.f32 0.0, %v1060
    %v1062 = vpop.f32.mrf.mxu0
    %1063 = vdwg.mxu0
    %v1064 = vsel %vm559, %v522, 0
    %1066 = vmatprep.subr.mxu0 0.0
    %1067 = vmatpush1.msra.mxu0 0.0
    %1068 = vmatprep.subr.mxu0 0.0
    %1069 = vmatpush1.msra.mxu0 0.0
    %1070 = vmatprep.subr.mxu0 0.0
    %1071 = vmatpush1.msra.mxu0 0.0
    %1072 = vmatprep.subr.mxu0 0.0
    %1073 = vmatpush1.msra.mxu0 0.0
    %1074 = vmatprep.subr.mxu0 0.0
    %1075 = vmatpush1.msra.mxu0 0.0
    %1076 = vmatprep.subr.mxu0 0.0
    %1077 = vmatpush1.msra.mxu0 0.0
    %1078 = vmatprep.subr.mxu0 0.0
    %1079 = vmatpush1.msra.mxu0 0.0
    %1080 = vmatprep.subr.mxu0 0.0
    %1081 = vmatpush1.msra.mxu0 0.0
    %1082 = vmatprep.subr.mxu0 0.0
    %1083 = vmatpush1.msra.mxu0 0.0
    %1084 = vmatprep.subr.mxu0 0.0
    %1085 = vmatpush1.msra.mxu0 0.0
    %1086 = vmatprep.subr.mxu0 0.0
    %1087 = vmatpush1.msra.mxu0 0.0
    %1088 = vmatprep.subr.mxu0 0.0
    %1089 = vmatpush1.msra.mxu0 0.0
    %1090 = vmatprep.subr.mxu0 0.0
    %1091 = vmatpush1.msra.mxu0 0.0
    %1092 = vmatprep.subr.mxu0 0.0
    %1093 = vmatpush1.msra.mxu0 0.0
    %1094 = vmatprep.subr.mxu0 0.0
    %1095 = vmatpush1.msra.mxu0 %v542
    %1096 = vmatprep.subr.mxu0 0.0
    %1097 = vmatpush1.msra.mxu0 %v541
    %1098 = vmatprep.subr.mxu0 0.0
    %1099 = vmatpush2.msra.mxu0 0.0
    %1100 = vmatprep.subr.mxu0 0.0
    %1101 = vmatpush2.msra.mxu0 0.0
    %1102 = vmatprep.subr.mxu0 0.0
    %1103 = vmatpush2.msra.mxu0 0.0
    %1104 = vmatprep.subr.mxu0 0.0
    %1105 = vmatpush2.msra.mxu0 0.0
    %1106 = vmatprep.subr.mxu0 0.0
    %1107 = vmatpush2.msra.mxu0 0.0
    %1108 = vmatprep.subr.mxu0 0.0
    %1109 = vmatpush2.msra.mxu0 0.0
    %1110 = vmatprep.subr.mxu0 0.0
    %1111 = vmatpush2.msra.mxu0 0.0
    %1112 = vmatprep.subr.mxu0 0.0
    %1113 = vmatpush2.msra.mxu0 0.0
    %1114 = vmatprep.subr.mxu0 0.0
    %1115 = vmatpush2.msra.mxu0 0.0
    %1116 = vmatprep.subr.mxu0 0.0
    %1117 = vmatpush2.msra.mxu0 0.0
    %1118 = vmatprep.subr.mxu0 0.0
    %1119 = vmatpush2.msra.mxu0 0.0
    %1120 = vmatprep.subr.mxu0 0.0
    %1121 = vmatpush2.msra.mxu0 0.0
    %1122 = vmatprep.subr.mxu0 0.0
    %1123 = vmatpush2.msra.mxu0 0.0
    %1124 = vmatprep.subr.mxu0 0.0
    %1125 = vmatpush2.msra.mxu0 0.0
    %1126 = vmatprep.subr.mxu0 0.0
    %1127 = vmatpush2.msra.mxu0 0.0
    %1128 = vmatprep.subr.mxu0 0.0
    %1129 = vmatpush2.msra.mxu0 0.0
    %1130 = vmatprep.mubr.f32.mxu0 0.0
    %1131 = vmatmul.mubr.f32.gmra.mxu0 %v1064
    %v1132 = vpop.f32.mrf.mxu0
    %v1133 = vadd.f32 0.0, %v1132
    %v1134 = vpop.f32.mrf.mxu0
    %1135 = vdwg.mxu0
    %v1136 = vsel %vm559, %v493, 0
    %1138 = vmatprep.subr.mxu0 0.0
    %1139 = vmatpush1.msra.mxu0 0.0
    %1140 = vmatprep.subr.mxu0 0.0
    %1141 = vmatpush1.msra.mxu0 0.0
    %1142 = vmatprep.subr.mxu0 0.0
    %1143 = vmatpush1.msra.mxu0 0.0
    %1144 = vmatprep.subr.mxu0 0.0
    %1145 = vmatpush1.msra.mxu0 0.0
    %1146 = vmatprep.subr.mxu0 0.0
    %1147 = vmatpush1.msra.mxu0 0.0
    %1148 = vmatprep.subr.mxu0 0.0
    %1149 = vmatpush1.msra.mxu0 0.0
    %1150 = vmatprep.subr.mxu0 0.0
    %1151 = vmatpush1.msra.mxu0 0.0
    %1152 = vmatprep.subr.mxu0 0.0
    %1153 = vmatpush1.msra.mxu0 0.0
    %1154 = vmatprep.subr.mxu0 0.0
    %1155 = vmatpush1.msra.mxu0 0.0
    %1156 = vmatprep.subr.mxu0 0.0
    %1157 = vmatpush1.msra.mxu0 0.0
    %1158 = vmatprep.subr.mxu0 0.0
    %1159 = vmatpush1.msra.mxu0 0.0
    %1160 = vmatprep.subr.mxu0 0.0
    %1161 = vmatpush1.msra.mxu0 0.0
    %1162 = vmatprep.subr.mxu0 0.0
    %1163 = vmatpush1.msra.mxu0 0.0
    %1164 = vmatprep.subr.mxu0 0.0
    %1165 = vmatpush1.msra.mxu0 0.0
    %1166 = vmatprep.subr.mxu0 0.0
    %1167 = vmatpush1.msra.mxu0 %v544
    %1168 = vmatprep.subr.mxu0 0.0
    %1169 = vmatpush1.msra.mxu0 %v543
    %1170 = vmatprep.subr.mxu0 0.0
    %1171 = vmatpush2.msra.mxu0 0.0
    %1172 = vmatprep.subr.mxu0 0.0
    %1173 = vmatpush2.msra.mxu0 0.0
    %1174 = vmatprep.subr.mxu0 0.0
    %1175 = vmatpush2.msra.mxu0 0.0
    %1176 = vmatprep.subr.mxu0 0.0
    %1177 = vmatpush2.msra.mxu0 0.0
    %1178 = vmatprep.subr.mxu0 0.0
    %1179 = vmatpush2.msra.mxu0 0.0
    %1180 = vmatprep.subr.mxu0 0.0
    %1181 = vmatpush2.msra.mxu0 0.0
    %1182 = vmatprep.subr.mxu0 0.0
    %1183 = vmatpush2.msra.mxu0 0.0
    %1184 = vmatprep.subr.mxu0 0.0
    %1185 = vmatpush2.msra.mxu0 0.0
    %1186 = vmatprep.subr.mxu0 0.0
    %1187 = vmatpush2.msra.mxu0 0.0
    %1188 = vmatprep.subr.mxu0 0.0
    %1189 = vmatpush2.msra.mxu0 0.0
    %1190 = vmatprep.subr.mxu0 0.0
    %1191 = vmatpush2.msra.mxu0 0.0
    %1192 = vmatprep.subr.mxu0 0.0
    %1193 = vmatpush2.msra.mxu0 0.0
    %1194 = vmatprep.subr.mxu0 0.0
    %1195 = vmatpush2.msra.mxu0 0.0
    %1196 = vmatprep.subr.mxu0 0.0
    %1197 = vmatpush2.msra.mxu0 0.0
    %1198 = vmatprep.subr.mxu0 0.0
    %1199 = vmatpush2.msra.mxu0 0.0
    %1200 = vmatprep.subr.mxu0 0.0
    %1201 = vmatpush2.msra.mxu0 0.0
    %1202 = vmatprep.mubr.f32.mxu0 0.0
    %1203 = vmatmul.mubr.f32.gmra.mxu0 %v1136
    %v1204 = vpop.f32.mrf.mxu0
    %v1205 = vadd.f32 0.0, %v1204
    %v1206 = vpop.f32.mrf.mxu0
    %1207 = vdwg.mxu0
    %v1208 = vsel %vm559, %v523, 0
    %1210 = vmatprep.subr.mxu0 0.0
    %1211 = vmatpush1.msra.mxu0 0.0
    %1212 = vmatprep.subr.mxu0 0.0
    %1213 = vmatpush1.msra.mxu0 0.0
    %1214 = vmatprep.subr.mxu0 0.0
    %1215 = vmatpush1.msra.mxu0 0.0
    %1216 = vmatprep.subr.mxu0 0.0
    %1217 = vmatpush1.msra.mxu0 0.0
    %1218 = vmatprep.subr.mxu0 0.0
    %1219 = vmatpush1.msra.mxu0 0.0
    %1220 = vmatprep.subr.mxu0 0.0
    %1221 = vmatpush1.msra.mxu0 0.0
    %1222 = vmatprep.subr.mxu0 0.0
    %1223 = vmatpush1.msra.mxu0 0.0
    %1224 = vmatprep.subr.mxu0 0.0
    %1225 = vmatpush1.msra.mxu0 0.0
    %1226 = vmatprep.subr.mxu0 0.0
    %1227 = vmatpush1.msra.mxu0 0.0
    %1228 = vmatprep.subr.mxu0 0.0
    %1229 = vmatpush1.msra.mxu0 0.0
    %1230 = vmatprep.subr.mxu0 0.0
    %1231 = vmatpush1.msra.mxu0 0.0
    %1232 = vmatprep.subr.mxu0 0.0
    %1233 = vmatpush1.msra.mxu0 0.0
    %1234 = vmatprep.subr.mxu0 0.0
    %1235 = vmatpush1.msra.mxu0 0.0
    %1236 = vmatprep.subr.mxu0 0.0
    %1237 = vmatpush1.msra.mxu0 0.0
    %1238 = vmatprep.subr.mxu0 0.0
    %1239 = vmatpush1.msra.mxu0 %v546
    %1240 = vmatprep.subr.mxu0 0.0
    %1241 = vmatpush1.msra.mxu0 %v545
    %1242 = vmatprep.subr.mxu0 0.0
    %1243 = vmatpush2.msra.mxu0 0.0
    %1244 = vmatprep.subr.mxu0 0.0
    %1245 = vmatpush2.msra.mxu0 0.0
    %1246 = vmatprep.subr.mxu0 0.0
    %1247 = vmatpush2.msra.mxu0 0.0
    %1248 = vmatprep.subr.mxu0 0.0
    %1249 = vmatpush2.msra.mxu0 0.0
    %1250 = vmatprep.subr.mxu0 0.0
    %1251 = vmatpush2.msra.mxu0 0.0
    %1252 = vmatprep.subr.mxu0 0.0
    %1253 = vmatpush2.msra.mxu0 0.0
    %1254 = vmatprep.subr.mxu0 0.0
    %1255 = vmatpush2.msra.mxu0 0.0
    %1256 = vmatprep.subr.mxu0 0.0
    %1257 = vmatpush2.msra.mxu0 0.0
    %1258 = vmatprep.subr.mxu0 0.0
    %1259 = vmatpush2.msra.mxu0 0.0
    %1260 = vmatprep.subr.mxu0 0.0
    %1261 = vmatpush2.msra.mxu0 0.0
    %1262 = vmatprep.subr.mxu0 0.0
    %1263 = vmatpush2.msra.mxu0 0.0
    %1264 = vmatprep.subr.mxu0 0.0
    %1265 = vmatpush2.msra.mxu0 0.0
    %1266 = vmatprep.subr.mxu0 0.0
    %1267 = vmatpush2.msra.mxu0 0.0
    %1268 = vmatprep.subr.mxu0 0.0
    %1269 = vmatpush2.msra.mxu0 0.0
    %1270 = vmatprep.subr.mxu0 0.0
    %1271 = vmatpush2.msra.mxu0 0.0
    %1272 = vmatprep.subr.mxu0 0.0
    %1273 = vmatpush2.msra.mxu0 0.0
    %1274 = vmatprep.mubr.f32.mxu0 0.0
    %1275 = vmatmul.mubr.f32.gmra.mxu0 %v1208
    %v1276 = vpop.f32.mrf.mxu0
    %v1277 = vadd.f32 0.0, %v1276
    %v1278 = vpop.f32.mrf.mxu0
    %1279 = vdwg.mxu0
    %v1280 = vsel %vm559, %v498, 0
    %1282 = vmatprep.subr.mxu0 0.0
    %1283 = vmatpush1.msra.mxu0 0.0
    %1284 = vmatprep.subr.mxu0 0.0
    %1285 = vmatpush1.msra.mxu0 0.0
    %1286 = vmatprep.subr.mxu0 0.0
    %1287 = vmatpush1.msra.mxu0 0.0
    %1288 = vmatprep.subr.mxu0 0.0
    %1289 = vmatpush1.msra.mxu0 0.0
    %1290 = vmatprep.subr.mxu0 0.0
    %1291 = vmatpush1.msra.mxu0 0.0
    %1292 = vmatprep.subr.mxu0 0.0
    %1293 = vmatpush1.msra.mxu0 0.0
    %1294 = vmatprep.subr.mxu0 0.0
    %1295 = vmatpush1.msra.mxu0 0.0
    %1296 = vmatprep.subr.mxu0 0.0
    %1297 = vmatpush1.msra.mxu0 0.0
    %1298 = vmatprep.subr.mxu0 0.0
    %1299 = vmatpush1.msra.mxu0 0.0
    %1300 = vmatprep.subr.mxu0 0.0
    %1301 = vmatpush1.msra.mxu0 0.0
    %1302 = vmatprep.subr.mxu0 0.0
    %1303 = vmatpush1.msra.mxu0 0.0
    %1304 = vmatprep.subr.mxu0 0.0
    %1305 = vmatpush1.msra.mxu0 0.0
    %1306 = vmatprep.subr.mxu0 0.0
    %1307 = vmatpush1.msra.mxu0 0.0
    %1308 = vmatprep.subr.mxu0 0.0
    %1309 = vmatpush1.msra.mxu0 0.0
    %1310 = vmatprep.subr.mxu0 0.0
    %1311 = vmatpush1.msra.mxu0 %v548
    %1312 = vmatprep.subr.mxu0 0.0
    %1313 = vmatpush1.msra.mxu0 %v547
    %1314 = vmatprep.subr.mxu0 0.0
    %1315 = vmatpush2.msra.mxu0 0.0
    %1316 = vmatprep.subr.mxu0 0.0
    %1317 = vmatpush2.msra.mxu0 0.0
    %1318 = vmatprep.subr.mxu0 0.0
    %1319 = vmatpush2.msra.mxu0 0.0
    %1320 = vmatprep.subr.mxu0 0.0
    %1321 = vmatpush2.msra.mxu0 0.0
    %1322 = vmatprep.subr.mxu0 0.0
    %1323 = vmatpush2.msra.mxu0 0.0
    %1324 = vmatprep.subr.mxu0 0.0
    %1325 = vmatpush2.msra.mxu0 0.0
    %1326 = vmatprep.subr.mxu0 0.0
    %1327 = vmatpush2.msra.mxu0 0.0
    %1328 = vmatprep.subr.mxu0 0.0
    %1329 = vmatpush2.msra.mxu0 0.0
    %1330 = vmatprep.subr.mxu0 0.0
    %1331 = vmatpush2.msra.mxu0 0.0
    %1332 = vmatprep.subr.mxu0 0.0
    %1333 = vmatpush2.msra.mxu0 0.0
    %1334 = vmatprep.subr.mxu0 0.0
    %1335 = vmatpush2.msra.mxu0 0.0
    %1336 = vmatprep.subr.mxu0 0.0
    %1337 = vmatpush2.msra.mxu0 0.0
    %1338 = vmatprep.subr.mxu0 0.0
    %1339 = vmatpush2.msra.mxu0 0.0
    %1340 = vmatprep.subr.mxu0 0.0
    %1341 = vmatpush2.msra.mxu0 0.0
    %1342 = vmatprep.subr.mxu0 0.0
    %1343 = vmatpush2.msra.mxu0 0.0
    %1344 = vmatprep.subr.mxu0 0.0
    %1345 = vmatpush2.msra.mxu0 0.0
    %1346 = vmatprep.mubr.f32.mxu0 0.0
    %1347 = vmatmul.mubr.f32.gmra.mxu0 %v1280
    %v1348 = vpop.f32.mrf.mxu0
    %v1349 = vadd.f32 0.0, %v1348
    %v1350 = vpop.f32.mrf.mxu0
    %1351 = vdwg.mxu0
    %v1352 = vsel %vm559, %v524, 0
    %1354 = vmatprep.subr.mxu0 0.0
    %1355 = vmatpush1.msra.mxu0 0.0
    %1356 = vmatprep.subr.mxu0 0.0
    %1357 = vmatpush1.msra.mxu0 0.0
    %1358 = vmatprep.subr.mxu0 0.0
    %1359 = vmatpush1.msra.mxu0 0.0
    %1360 = vmatprep.subr.mxu0 0.0
    %1361 = vmatpush1.msra.mxu0 0.0
    %1362 = vmatprep.subr.mxu0 0.0
    %1363 = vmatpush1.msra.mxu0 0.0
    %1364 = vmatprep.subr.mxu0 0.0
    %1365 = vmatpush1.msra.mxu0 0.0
    %1366 = vmatprep.subr.mxu0 0.0
    %1367 = vmatpush1.msra.mxu0 0.0
    %1368 = vmatprep.subr.mxu0 0.0
    %1369 = vmatpush1.msra.mxu0 0.0
    %1370 = vmatprep.subr.mxu0 0.0
    %1371 = vmatpush1.msra.mxu0 0.0
    %1372 = vmatprep.subr.mxu0 0.0
    %1373 = vmatpush1.msra.mxu0 0.0
    %1374 = vmatprep.subr.mxu0 0.0
    %1375 = vmatpush1.msra.mxu0 0.0
    %1376 = vmatprep.subr.mxu0 0.0
    %1377 = vmatpush1.msra.mxu0 0.0
    %1378 = vmatprep.subr.mxu0 0.0
    %1379 = vmatpush1.msra.mxu0 0.0
    %1380 = vmatprep.subr.mxu0 0.0
    %1381 = vmatpush1.msra.mxu0 0.0
    %1382 = vmatprep.subr.mxu0 0.0
    %1383 = vmatpush1.msra.mxu0 %v550
    %1384 = vmatprep.subr.mxu0 0.0
    %1385 = vmatpush1.msra.mxu0 %v549
    %1386 = vmatprep.subr.mxu0 0.0
    %1387 = vmatpush2.msra.mxu0 0.0
    %1388 = vmatprep.subr.mxu0 0.0
    %1389 = vmatpush2.msra.mxu0 0.0
    %1390 = vmatprep.subr.mxu0 0.0
    %1391 = vmatpush2.msra.mxu0 0.0
    %1392 = vmatprep.subr.mxu0 0.0
    %1393 = vmatpush2.msra.mxu0 0.0
    %1394 = vmatprep.subr.mxu0 0.0
    %1395 = vmatpush2.msra.mxu0 0.0
    %1396 = vmatprep.subr.mxu0 0.0
    %1397 = vmatpush2.msra.mxu0 0.0
    %1398 = vmatprep.subr.mxu0 0.0
    %1399 = vmatpush2.msra.mxu0 0.0
    %1400 = vmatprep.subr.mxu0 0.0
    %1401 = vmatpush2.msra.mxu0 0.0
    %1402 = vmatprep.subr.mxu0 0.0
    %1403 = vmatpush2.msra.mxu0 0.0
    %1404 = vmatprep.subr.mxu0 0.0
    %1405 = vmatpush2.msra.mxu0 0.0
    %1406 = vmatprep.subr.mxu0 0.0
    %1407 = vmatpush2.msra.mxu0 0.0
    %1408 = vmatprep.subr.mxu0 0.0
    %1409 = vmatpush2.msra.mxu0 0.0
    %1410 = vmatprep.subr.mxu0 0.0
    %1411 = vmatpush2.msra.mxu0 0.0
    %1412 = vmatprep.subr.mxu0 0.0
    %1413 = vmatpush2.msra.mxu0 0.0
    %1414 = vmatprep.subr.mxu0 0.0
    %1415 = vmatpush2.msra.mxu0 0.0
    %1416 = vmatprep.subr.mxu0 0.0
    %1417 = vmatpush2.msra.mxu0 0.0
    %1418 = vmatprep.mubr.f32.mxu0 0.0
    %1419 = vmatmul.mubr.f32.gmra.mxu0 %v1352
    %v1420 = vpop.f32.mrf.mxu0
    %v1421 = vadd.f32 0.0, %v1420
    %v1422 = vpop.f32.mrf.mxu0
    %1423 = vdwg.mxu0
    %v1424 = vsel %vm559, %v503, 0
    %1426 = vmatprep.subr.mxu0 0.0
    %1427 = vmatpush1.msra.mxu0 0.0
    %1428 = vmatprep.subr.mxu0 0.0
    %1429 = vmatpush1.msra.mxu0 0.0
    %1430 = vmatprep.subr.mxu0 0.0
    %1431 = vmatpush1.msra.mxu0 0.0
    %1432 = vmatprep.subr.mxu0 0.0
    %1433 = vmatpush1.msra.mxu0 0.0
    %1434 = vmatprep.subr.mxu0 0.0
    %1435 = vmatpush1.msra.mxu0 0.0
    %1436 = vmatprep.subr.mxu0 0.0
    %1437 = vmatpush1.msra.mxu0 0.0
    %1438 = vmatprep.subr.mxu0 0.0
    %1439 = vmatpush1.msra.mxu0 0.0
    %1440 = vmatprep.subr.mxu0 0.0
    %1441 = vmatpush1.msra.mxu0 0.0
    %1442 = vmatprep.subr.mxu0 0.0
    %1443 = vmatpush1.msra.mxu0 0.0
    %1444 = vmatprep.subr.mxu0 0.0
    %1445 = vmatpush1.msra.mxu0 0.0
    %1446 = vmatprep.subr.mxu0 0.0
    %1447 = vmatpush1.msra.mxu0 0.0
    %1448 = vmatprep.subr.mxu0 0.0
    %1449 = vmatpush1.msra.mxu0 0.0
    %1450 = vmatprep.subr.mxu0 0.0
    %1451 = vmatpush1.msra.mxu0 0.0
    %1452 = vmatprep.subr.mxu0 0.0
    %1453 = vmatpush1.msra.mxu0 0.0
    %1454 = vmatprep.subr.mxu0 0.0
    %1455 = vmatpush1.msra.mxu0 %v552
    %1456 = vmatprep.subr.mxu0 0.0
    %1457 = vmatpush1.msra.mxu0 %v551
    %1458 = vmatprep.subr.mxu0 0.0
    %1459 = vmatpush2.msra.mxu0 0.0
    %1460 = vmatprep.subr.mxu0 0.0
    %1461 = vmatpush2.msra.mxu0 0.0
    %1462 = vmatprep.subr.mxu0 0.0
    %1463 = vmatpush2.msra.mxu0 0.0
    %1464 = vmatprep.subr.mxu0 0.0
    %1465 = vmatpush2.msra.mxu0 0.0
    %1466 = vmatprep.subr.mxu0 0.0
    %1467 = vmatpush2.msra.mxu0 0.0
    %1468 = vmatprep.subr.mxu0 0.0
    %1469 = vmatpush2.msra.mxu0 0.0
    %1470 = vmatprep.subr.mxu0 0.0
    %1471 = vmatpush2.msra.mxu0 0.0
    %1472 = vmatprep.subr.mxu0 0.0
    %1473 = vmatpush2.msra.mxu0 0.0
    %1474 = vmatprep.subr.mxu0 0.0
    %1475 = vmatpush2.msra.mxu0 0.0
    %1476 = vmatprep.subr.mxu0 0.0
    %1477 = vmatpush2.msra.mxu0 0.0
    %1478 = vmatprep.subr.mxu0 0.0
    %1479 = vmatpush2.msra.mxu0 0.0
    %1480 = vmatprep.subr.mxu0 0.0
    %1481 = vmatpush2.msra.mxu0 0.0
    %1482 = vmatprep.subr.mxu0 0.0
    %1483 = vmatpush2.msra.mxu0 0.0
    %1484 = vmatprep.subr.mxu0 0.0
    %1485 = vmatpush2.msra.mxu0 0.0
    %1486 = vmatprep.subr.mxu0 0.0
    %1487 = vmatpush2.msra.mxu0 0.0
    %1488 = vmatprep.subr.mxu0 0.0
    %1489 = vmatpush2.msra.mxu0 0.0
    %1490 = vmatprep.mubr.f32.mxu0 0.0
    %1491 = vmatmul.mubr.f32.gmra.mxu0 %v1424
    %v1492 = vpop.f32.mrf.mxu0
    %v1493 = vadd.f32 0.0, %v1492
    %v1494 = vpop.f32.mrf.mxu0
    %1495 = vdwg.mxu0
    %v1496 = vsel %vm559, %v525, 0
    %1498 = vmatprep.subr.mxu0 0.0
    %1499 = vmatpush1.msra.mxu0 0.0
    %1500 = vmatprep.subr.mxu0 0.0
    %1501 = vmatpush1.msra.mxu0 0.0
    %1502 = vmatprep.subr.mxu0 0.0
    %1503 = vmatpush1.msra.mxu0 0.0
    %1504 = vmatprep.subr.mxu0 0.0
    %1505 = vmatpush1.msra.mxu0 0.0
    %1506 = vmatprep.subr.mxu0 0.0
    %1507 = vmatpush1.msra.mxu0 0.0
    %1508 = vmatprep.subr.mxu0 0.0
    %1509 = vmatpush1.msra.mxu0 0.0
    %1510 = vmatprep.subr.mxu0 0.0
    %1511 = vmatpush1.msra.mxu0 0.0
    %1512 = vmatprep.subr.mxu0 0.0
    %1513 = vmatpush1.msra.mxu0 0.0
    %1514 = vmatprep.subr.mxu0 0.0
    %1515 = vmatpush1.msra.mxu0 0.0
    %1516 = vmatprep.subr.mxu0 0.0
    %1517 = vmatpush1.msra.mxu0 0.0
    %1518 = vmatprep.subr.mxu0 0.0
    %1519 = vmatpush1.msra.mxu0 0.0
    %1520 = vmatprep.subr.mxu0 0.0
    %1521 = vmatpush1.msra.mxu0 0.0
    %1522 = vmatprep.subr.mxu0 0.0
    %1523 = vmatpush1.msra.mxu0 0.0
    %1524 = vmatprep.subr.mxu0 0.0
    %1525 = vmatpush1.msra.mxu0 0.0
    %1526 = vmatprep.subr.mxu0 0.0
    %1527 = vmatpush1.msra.mxu0 %v554
    %1528 = vmatprep.subr.mxu0 0.0
    %1529 = vmatpush1.msra.mxu0 %v553
    %1530 = vmatprep.subr.mxu0 0.0
    %1531 = vmatpush2.msra.mxu0 0.0
    %1532 = vmatprep.subr.mxu0 0.0
    %1533 = vmatpush2.msra.mxu0 0.0
    %1534 = vmatprep.subr.mxu0 0.0
    %1535 = vmatpush2.msra.mxu0 0.0
    %1536 = vmatprep.subr.mxu0 0.0
    %1537 = vmatpush2.msra.mxu0 0.0
    %1538 = vmatprep.subr.mxu0 0.0
    %1539 = vmatpush2.msra.mxu0 0.0
    %1540 = vmatprep.subr.mxu0 0.0
    %1541 = vmatpush2.msra.mxu0 0.0
    %1542 = vmatprep.subr.mxu0 0.0
    %1543 = vmatpush2.msra.mxu0 0.0
    %1544 = vmatprep.subr.mxu0 0.0
    %1545 = vmatpush2.msra.mxu0 0.0
    %1546 = vmatprep.subr.mxu0 0.0
    %1547 = vmatpush2.msra.mxu0 0.0
    %1548 = vmatprep.subr.mxu0 0.0
    %1549 = vmatpush2.msra.mxu0 0.0
    %1550 = vmatprep.subr.mxu0 0.0
    %1551 = vmatpush2.msra.mxu0 0.0
    %1552 = vmatprep.subr.mxu0 0.0
    %1553 = vmatpush2.msra.mxu0 0.0
    %1554 = vmatprep.subr.mxu0 0.0
    %1555 = vmatpush2.msra.mxu0 0.0
    %1556 = vmatprep.subr.mxu0 0.0
    %1557 = vmatpush2.msra.mxu0 0.0
    %1558 = vmatprep.subr.mxu0 0.0
    %1559 = vmatpush2.msra.mxu0 0.0
    %1560 = vmatprep.subr.mxu0 0.0
    %1561 = vmatpush2.msra.mxu0 0.0
    %1562 = vmatprep.mubr.f32.mxu0 0.0
    %1563 = vmatmul.mubr.f32.gmra.mxu0 %v1496
    %v1564 = vpop.f32.mrf.mxu0
    %v1565 = vadd.f32 0.0, %v1564
    %v1566 = vpop.f32.mrf.mxu0
    %1567 = vdwg.mxu0
    %v1568 = vsel %vm559, %v508, 0
    %1570 = vmatprep.subr.mxu0 0.0
    %1571 = vmatpush1.msra.mxu0 0.0
    %1572 = vmatprep.subr.mxu0 0.0
    %1573 = vmatpush1.msra.mxu0 0.0
    %1574 = vmatprep.subr.mxu0 0.0
    %1575 = vmatpush1.msra.mxu0 0.0
    %1576 = vmatprep.subr.mxu0 0.0
    %1577 = vmatpush1.msra.mxu0 0.0
    %1578 = vmatprep.subr.mxu0 0.0
    %1579 = vmatpush1.msra.mxu0 0.0
    %1580 = vmatprep.subr.mxu0 0.0
    %1581 = vmatpush1.msra.mxu0 0.0
    %1582 = vmatprep.subr.mxu0 0.0
    %1583 = vmatpush1.msra.mxu0 0.0
    %1584 = vmatprep.subr.mxu0 0.0
    %1585 = vmatpush1.msra.mxu0 0.0
    %1586 = vmatprep.subr.mxu0 0.0
    %1587 = vmatpush1.msra.mxu0 0.0
    %1588 = vmatprep.subr.mxu0 0.0
    %1589 = vmatpush1.msra.mxu0 0.0
    %1590 = vmatprep.subr.mxu0 0.0
    %1591 = vmatpush1.msra.mxu0 0.0
    %1592 = vmatprep.subr.mxu0 0.0
    %1593 = vmatpush1.msra.mxu0 0.0
    %1594 = vmatprep.subr.mxu0 0.0
    %1595 = vmatpush1.msra.mxu0 0.0
    %1596 = vmatprep.subr.mxu0 0.0
    %1597 = vmatpush1.msra.mxu0 0.0
    %1598 = vmatprep.subr.mxu0 0.0
    %1599 = vmatpush1.msra.mxu0 %v556
    %1600 = vmatprep.subr.mxu0 0.0
    %1601 = vmatpush1.msra.mxu0 %v555
    %1602 = vmatprep.subr.mxu0 0.0
    %1603 = vmatpush2.msra.mxu0 0.0
    %1604 = vmatprep.subr.mxu0 0.0
    %1605 = vmatpush2.msra.mxu0 0.0
    %1606 = vmatprep.subr.mxu0 0.0
    %1607 = vmatpush2.msra.mxu0 0.0
    %1608 = vmatprep.subr.mxu0 0.0
    %1609 = vmatpush2.msra.mxu0 0.0
    %1610 = vmatprep.subr.mxu0 0.0
    %1611 = vmatpush2.msra.mxu0 0.0
    %1612 = vmatprep.subr.mxu0 0.0
    %1613 = vmatpush2.msra.mxu0 0.0
    %1614 = vmatprep.subr.mxu0 0.0
    %1615 = vmatpush2.msra.mxu0 0.0
    %1616 = vmatprep.subr.mxu0 0.0
    %1617 = vmatpush2.msra.mxu0 0.0
    %1618 = vmatprep.subr.mxu0 0.0
    %1619 = vmatpush2.msra.mxu0 0.0
    %1620 = vmatprep.subr.mxu0 0.0
    %1621 = vmatpush2.msra.mxu0 0.0
    %1622 = vmatprep.subr.mxu0 0.0
    %1623 = vmatpush2.msra.mxu0 0.0
    %1624 = vmatprep.subr.mxu0 0.0
    %1625 = vmatpush2.msra.mxu0 0.0
    %1626 = vmatprep.subr.mxu0 0.0
    %1627 = vmatpush2.msra.mxu0 0.0
    %1628 = vmatprep.subr.mxu0 0.0
    %1629 = vmatpush2.msra.mxu0 0.0
    %1630 = vmatprep.subr.mxu0 0.0
    %1631 = vmatpush2.msra.mxu0 0.0
    %1632 = vmatprep.subr.mxu0 0.0
    %1633 = vmatpush2.msra.mxu0 0.0
    %1634 = vmatprep.mubr.f32.mxu0 0.0
    %1635 = vmatmul.mubr.f32.gmra.mxu0 %v1568
    %v1636 = vpop.f32.mrf.mxu0
    %v1637 = vadd.f32 0.0, %v1636
    %v1638 = vpop.f32.mrf.mxu0
    %1639 = vdwg.mxu0
    %v1640 = vsel %vm559, %v526, 0
    %1642 = vmatprep.subr.mxu0 0.0
    %1643 = vmatpush1.msra.mxu0 0.0
    %1644 = vmatprep.subr.mxu0 0.0
    %1645 = vmatpush1.msra.mxu0 0.0
    %1646 = vmatprep.subr.mxu0 0.0
    %1647 = vmatpush1.msra.mxu0 0.0
    %1648 = vmatprep.subr.mxu0 0.0
    %1649 = vmatpush1.msra.mxu0 0.0
    %1650 = vmatprep.subr.mxu0 0.0
    %1651 = vmatpush1.msra.mxu0 0.0
    %1652 = vmatprep.subr.mxu0 0.0
    %1653 = vmatpush1.msra.mxu0 0.0
    %1654 = vmatprep.subr.mxu0 0.0
    %1655 = vmatpush1.msra.mxu0 0.0
    %1656 = vmatprep.subr.mxu0 0.0
    %1657 = vmatpush1.msra.mxu0 0.0
    %1658 = vmatprep.subr.mxu0 0.0
    %1659 = vmatpush1.msra.mxu0 0.0
    %1660 = vmatprep.subr.mxu0 0.0
    %1661 = vmatpush1.msra.mxu0 0.0
    %1662 = vmatprep.subr.mxu0 0.0
    %1663 = vmatpush1.msra.mxu0 0.0
    %1664 = vmatprep.subr.mxu0 0.0
    %1665 = vmatpush1.msra.mxu0 0.0
    %1666 = vmatprep.subr.mxu0 0.0
    %1667 = vmatpush1.msra.mxu0 0.0
    %1668 = vmatprep.subr.mxu0 0.0
    %1669 = vmatpush1.msra.mxu0 0.0
    %1670 = vmatprep.subr.mxu0 0.0
    %1671 = vmatpush1.msra.mxu0 %v558
    %1672 = vmatprep.subr.mxu0 0.0
    %1673 = vmatpush1.msra.mxu0 %v557
    %1674 = vmatprep.subr.mxu0 0.0
    %1675 = vmatpush2.msra.mxu0 0.0
    %1676 = vmatprep.subr.mxu0 0.0
    %1677 = vmatpush2.msra.mxu0 0.0
    %1678 = vmatprep.subr.mxu0 0.0
    %1679 = vmatpush2.msra.mxu0 0.0
    %1680 = vmatprep.subr.mxu0 0.0
    %1681 = vmatpush2.msra.mxu0 0.0
    %1682 = vmatprep.subr.mxu0 0.0
    %1683 = vmatpush2.msra.mxu0 0.0
    %1684 = vmatprep.subr.mxu0 0.0
    %1685 = vmatpush2.msra.mxu0 0.0
    %1686 = vmatprep.subr.mxu0 0.0
    %1687 = vmatpush2.msra.mxu0 0.0
    %1688 = vmatprep.subr.mxu0 0.0
    %1689 = vmatpush2.msra.mxu0 0.0
    %1690 = vmatprep.subr.mxu0 0.0
    %1691 = vmatpush2.msra.mxu0 0.0
    %1692 = vmatprep.subr.mxu0 0.0
    %1693 = vmatpush2.msra.mxu0 0.0
    %1694 = vmatprep.subr.mxu0 0.0
    %1695 = vmatpush2.msra.mxu0 0.0
    %1696 = vmatprep.subr.mxu0 0.0
    %1697 = vmatpush2.msra.mxu0 0.0
    %1698 = vmatprep.subr.mxu0 0.0
    %1699 = vmatpush2.msra.mxu0 0.0
    %1700 = vmatprep.subr.mxu0 0.0
    %1701 = vmatpush2.msra.mxu0 0.0
    %1702 = vmatprep.subr.mxu0 0.0
    %1703 = vmatpush2.msra.mxu0 0.0
    %1704 = vmatprep.subr.mxu0 0.0
    %1705 = vmatpush2.msra.mxu0 0.0
    %1706 = vmatprep.mubr.f32.mxu0 0.0
    %1707 = vmatmul.mubr.f32.gmra.mxu0 %v1640
    %v1708 = vpop.f32.mrf.mxu0
    %v1709 = vadd.f32 0.0, %v1708
    %v1710 = vpop.f32.mrf.mxu0
    %1711 = vdwg.mxu0
    %1720 = vst.msk [vmem:[#allocation5] sm:$0xff] %vm389, %v374
    %1721 = vst.msk [vmem:[#allocation5 + $0x8] sm:$0xff] %vm389, %v376
    %1722 = vst.msk [vmem:[#allocation5 + $0x10] sm:$0xff] %vm389, %v378
    %1723 = vst.msk [vmem:[#allocation5 + $0x18] sm:$0xff] %vm389, %v380
    %1724 = vst.msk [vmem:[#allocation5 + $0x20] sm:$0xff] %vm389, %v382
    %1725 = vst.msk [vmem:[#allocation5 + $0x28] sm:$0xff] %vm389, %v384
    %1726 = vst.msk [vmem:[#allocation5 + $0x30] sm:$0xff] %vm389, %v386
    %1727 = vst.msk [vmem:[#allocation5 + $0x38] sm:$0xff] %vm389, %v388
    %1736 = vrot.lane.b32.xlu0 %v298, 32
    %v1737 = vpop.permute.xlu0 %1736
    %1738 = vrot.lane.b32.xlu0 %v299, 32
    %v1739 = vpop.permute.xlu0 %1738
    %1740 = vrot.lane.b32.xlu0 %v300, 32
    %v1741 = vpop.permute.xlu0 %1740
    %1742 = vrot.lane.b32.xlu0 %v301, 32
    %v1743 = vpop.permute.xlu0 %1742
    %1744 = vrot.lane.b32.xlu0 %v302, 32
    %v1745 = vpop.permute.xlu0 %1744
    %1746 = vrot.lane.b32.xlu0 %v303, 32
    %v1747 = vpop.permute.xlu0 %1746
    %1748 = vrot.lane.b32.xlu0 %v304, 32
    %v1749 = vpop.permute.xlu0 %1748
    %1750 = vrot.lane.b32.xlu0 %v305, 32
    %v1751 = vpop.permute.xlu0 %1750
    %vm1760 = vcmask 523520
    %1761 = vst.msk [vmem:[#allocation5] sm:$0xff] %vm1760, %v1737
    %1762 = vst.msk [vmem:[#allocation5 + $0x8] sm:$0xff] %vm1760, %v1739
    %1763 = vst.msk [vmem:[#allocation5 + $0x10] sm:$0xff] %vm1760, %v1741
    %1764 = vst.msk [vmem:[#allocation5 + $0x18] sm:$0xff] %vm1760, %v1743
    %1765 = vst.msk [vmem:[#allocation5 + $0x20] sm:$0xff] %vm1760, %v1745
    %1766 = vst.msk [vmem:[#allocation5 + $0x28] sm:$0xff] %vm1760, %v1747
    %1767 = vst.msk [vmem:[#allocation5 + $0x30] sm:$0xff] %vm1760, %v1749
    %1768 = vst.msk [vmem:[#allocation5 + $0x38] sm:$0xff] %vm1760, %v1751
    %v1785 = vcombine.low %v629, %v701
    %v1786 = vcombine.low %v773, %v845
    %v1787 = vcombine.low %v917, %v989
    %v1788 = vcombine.low %v1061, %v1133
    %v1789 = vcombine.low %v1205, %v1277
    %v1790 = vcombine.low %v1349, %v1421
    %v1791 = vcombine.low %v1493, %v1565
    %v1792 = vcombine.low %v1637, %v1709
    %1793 = vrot.lane.b32.xlu0 %v1785, 64
    %v1794 = vpop.permute.xlu0 %1793
    %1795 = vrot.lane.b32.xlu0 %v1786, 64
    %v1796 = vpop.permute.xlu0 %1795
    %1797 = vrot.lane.b32.xlu0 %v1787, 64
    %v1798 = vpop.permute.xlu0 %1797
    %1799 = vrot.lane.b32.xlu0 %v1788, 64
    %v1800 = vpop.permute.xlu0 %1799
    %1801 = vrot.lane.b32.xlu0 %v1789, 64
    %v1802 = vpop.permute.xlu0 %1801
    %1803 = vrot.lane.b32.xlu0 %v1790, 64
    %v1804 = vpop.permute.xlu0 %1803
    %1805 = vrot.lane.b32.xlu0 %v1791, 64
    %v1806 = vpop.permute.xlu0 %1805
    %1807 = vrot.lane.b32.xlu0 %v1792, 64
    %v1808 = vpop.permute.xlu0 %1807
    %vm1817 = vcmask 654848
    %1818 = vst.msk [vmem:[#allocation5] sm:$0xff] %vm1817, %v1794
    %1819 = vst.msk [vmem:[#allocation5 + $0x8] sm:$0xff] %vm1817, %v1796
    %1820 = vst.msk [vmem:[#allocation5 + $0x10] sm:$0xff] %vm1817, %v1798
    %1821 = vst.msk [vmem:[#allocation5 + $0x18] sm:$0xff] %vm1817, %v1800
    %1822 = vst.msk [vmem:[#allocation5 + $0x20] sm:$0xff] %vm1817, %v1802
    %1823 = vst.msk [vmem:[#allocation5 + $0x28] sm:$0xff] %vm1817, %v1804
    %1824 = vst.msk [vmem:[#allocation5 + $0x30] sm:$0xff] %vm1817, %v1806
    %1825 = vst.msk [vmem:[#allocation5 + $0x38] sm:$0xff] %vm1817, %v1808
    %vm1826 = vcmask 1048192
    %1827 = vst.msk [vmem:[#allocation5] sm:$0xff] %vm1826, 0.0
    %1828 = vst.msk [vmem:[#allocation5 + $0x8] sm:$0xff] %vm1826, 0.0
    %1829 = vst.msk [vmem:[#allocation5 + $0x10] sm:$0xff] %vm1826, 0.0
    %1830 = vst.msk [vmem:[#allocation5 + $0x18] sm:$0xff] %vm1826, 0.0
    %1831 = vst.msk [vmem:[#allocation5 + $0x20] sm:$0xff] %vm1826, 0.0
    %1832 = vst.msk [vmem:[#allocation5 + $0x28] sm:$0xff] %vm1826, 0.0
    %1833 = vst.msk [vmem:[#allocation5 + $0x30] sm:$0xff] %vm1826, 0.0
    %1834 = vst.msk [vmem:[#allocation5 + $0x38] sm:$0xff] %vm1826, 0.0
    // Predicated region
    $region34: #{tpu_custom_call.1} parent=1 // pred_check
      _
    $region35: #{tpu_custom_call.1} parent=1 // pred_check_branch
      %1836 = sbr.rel (0) target = $region37
    $region36: #{tpu_custom_call.1} parent=1 // pred_region
      %s1838 = ssub.s32 1024, 1024
      %1839 = vsyncadd [#allocation4], %s1838
      %s1840 = sshll.u32 [#allocation5], 4
      %s1841 = int_to_ptr.vmem [resolvable:$true] %s1840
      %1846 = dma.vmem_to_hbm [thread:$0]  %s1841, 1024, %s7, [#allocation4], 128, 128, 8
    $region37: #{tpu_custom_call.1} parent=1 // pred_fallthru
      _
    // Predicated region
    $region38: #{tpu_custom_call.1} parent=1 // pred_check
      _
    $region39: #{tpu_custom_call.1} parent=1 // pred_check_branch
      %1848 = sbr.rel (0) target = $region41
    $region40: #{tpu_custom_call.1} parent=1 // pred_region
      %1849 = dma.done [#allocation4], 1024
    $region41: #{tpu_custom_call.1} parent=1 // pred_fallthru
      _
    %1850 = vsyncpa [#allocation3], 1
    %1851 = vsyncpa [#allocation4], 1

</llo_original>
